<compile_context>
chip_gen: v7x
topology: tpu7x:2x2x1
jax: 0.10.0
libtpu: 0.0.40
codegen_flags: <defaults>
</compile_context>

<pallas_src>
import math

import jax
import jax.numpy as jnp
from jax.experimental import pallas as pl
from jax.experimental.pallas import tpu as pltpu

LANE = 128
_MIN_TILE = 8
_MAX_TILE = 512


def _round_up(x, m):
    return ((x + m - 1) // m) * m


# --------------------------------------------------------------------------- #
# Kernel
# --------------------------------------------------------------------------- #
def autoencoder_kernel(
    x_ref,
    w1_ref, b1_ref,
    w2_ref, b2_ref,
    w3_ref, b3_ref,
    w4_ref, b4_ref,
    w5_ref, b5_ref,
    w6_ref, b6_ref,
    o_ref,
):
    """All six Linear(+activation) layers for one batch tile.

    Input tile and weights are bf16 (MXU-native) with f32 accumulation; bias
    add / ReLU / sigmoid run in f32 on the VPU/EUP (safe on v5e: no bf16 VPU).
    """

    def linear(h, w_ref, b_ref):
        # .astype is a no-op for the already-bf16 first-layer input.
        return (
            jnp.dot(h.astype(jnp.bfloat16), w_ref[...],
                    preferred_element_type=jnp.float32)
            + b_ref[...]
        )

    h = x_ref[...]                       # (tile, D) bf16 — straight into MXU
    # encoder
    h = jnp.maximum(linear(h, w1_ref, b1_ref), 0.0)
    h = jnp.maximum(linear(h, w2_ref, b2_ref), 0.0)
    h = jnp.maximum(linear(h, w3_ref, b3_ref), 0.0)
    # decoder
    h = jnp.maximum(linear(h, w4_ref, b4_ref), 0.0)
    h = jnp.maximum(linear(h, w5_ref, b5_ref), 0.0)
    h = linear(h, w6_ref, b6_ref)
    # sigmoid(h) == 0.5*(tanh(0.5*h)+1): a single EUP transcendental instead
    # of exp + a full-width divide over the (tile, D) f32 block.
    o_ref[...] = (0.5 * (jnp.tanh(0.5 * h) + 1.0)).astype(o_ref.dtype)


# --------------------------------------------------------------------------- #
# VMEM budgeting / tiling
# --------------------------------------------------------------------------- #
def _vmem_budget():
    """~75% of the chip's physical VMEM (v5e/v6e: 128 MiB -> ~96 MiB;
    v7x: 64 MiB -> 48 MiB).  Conservative 48 MiB if the query is unavailable."""
    try:
        cap = int(pltpu.get_tpu_info().vmem_capacity_bytes)
    except Exception:
        cap = 64 * 1024 * 1024
    return max(int(cap * 0.75), 32 * 1024 * 1024)


def _per_row_bytes(D, out_itemsize):
    # double-buffered bf16 input tile + double-buffered output tile
    # + ~2 live f32 (row, D) intermediates (pre-sigmoid result, epilogue temp)
    return 2 * D * 2 + 2 * D * out_itemsize + 2 * D * 4


def _choose_batch_tile(B, D, param_bytes, vmem_budget, out_itemsize):
    """Largest batch tile whose true VMEM footprint (pipelined I/O tiles,
    resident params, live activations) fits the budget; rounded to a
    lane/sublane-friendly size and small enough to leave >= 2 grid steps."""
    avail = max(vmem_budget - param_bytes, 2 * 1024 * 1024)
    tile = int(min(avail // _per_row_bytes(D, out_itemsize), _MAX_TILE, B))
    # >= 2 grid steps so v7x's two TensorCores both get work.
    if B >= 2 * _MIN_TILE:
        tile = min(tile, (B + 1) // 2)
    # Prefer multiples of 128 (clean vreg/MXU layout), else 16, else 8.
    if tile >= 128:
        tile = (tile // 128) * 128
    elif tile >= 16:
        tile = (tile // 16) * 16
    else:
        tile = max(_MIN_TILE, (tile // _MIN_TILE) * _MIN_TILE)
    return tile


# --------------------------------------------------------------------------- #
# Wrapper
# --------------------------------------------------------------------------- #
def _param_spec(arr, single_buffer):
    ndim = arr.ndim
    if single_buffer:
        # Constant index_map -> the block never changes; one VMEM buffer is
        # enough (double-buffering full-size weights is pure VMEM waste).
        return pl.BlockSpec(arr.shape, lambda i, _n=ndim: (0,) * _n,
                            pipeline_mode=pl.Buffered(1))
    return pl.BlockSpec(arr.shape, lambda i, _n=ndim: (0,) * _n)


def sentiment_autoencoder_forward(x, prepared, *, batch_tile=None,
                                  out_dtype=jnp.bfloat16):
    """x: (B, D) float (any float dtype).  prepared: dict from prepare_params().

    Returns sigmoid reconstruction of shape (B, D) in `out_dtype` (bf16 by
    default — halves the output HBM stream; cast outside if f32 is needed)."""
    B, D = x.shape
    ws = [prepared[f"w{i}"] for i in range(1, 7)]
    bs = [prepared[f"b{i}"] for i in range(1, 7)]
    assert ws[0].shape[0] == D and ws[5].shape[1] == D

    flat_params = []
    for w, b in zip(ws, bs):
        flat_params += [w, b]
    param_bytes = sum(int(a.size) * a.dtype.itemsize for a in flat_params)

    budget = _vmem_budget()
    out_itemsize = jnp.dtype(out_dtype).itemsize

    x_bf16 = x.astype(jnp.bfloat16)

    def run(tile, single_buffer):
        tile = max(_MIN_TILE, min(tile, _round_up(B, _MIN_TILE)))
        B_pad = _round_up(B, tile)
        x_pad = (jnp.pad(x_bf16, ((0, B_pad - B), (0, 0)))
                 if B_pad != B else x_bf16)
        grid = (B_pad // tile,)

        # Explicit VMEM limit from the actual footprint (+25% headroom).
        footprint = (param_bytes * (1 if single_buffer else 2)
                     + _per_row_bytes(D, out_itemsize) * tile)
        vmem_limit = min(max(int(1.25 * footprint), 16 * 1024 * 1024), budget)

        in_specs = [pl.BlockSpec((tile, D), lambda i: (i, 0))]
        in_specs += [_param_spec(p, single_buffer) for p in flat_params]

        out = pl.pallas_call(
            autoencoder_kernel,
            out_shape=jax.ShapeDtypeStruct((B_pad, D), out_dtype),
            grid_spec=pltpu.PrefetchScalarGridSpec(
                num_scalar_prefetch=0,
                grid=grid,
                in_specs=in_specs,
                out_specs=pl.BlockSpec((tile, D), lambda i: (i, 0)),
            ),
            compiler_params=pltpu.CompilerParams(
                # Batch axis is embarrassingly parallel; on v7x consider
                # pltpu.CORE_PARALLEL when targeting that chip explicitly.
                dimension_semantics=("parallel",),
                vmem_limit_bytes=vmem_limit,
            ),
        )(x_pad, *flat_params)
        return out[:B] if B_pad != B else out

    if batch_tile is None:
        batch_tile = _choose_batch_tile(B, D, param_bytes, budget, out_itemsize)

    try:
        return run(batch_tile, single_buffer=True)
    except (TypeError, NotImplementedError, ValueError,
            pltpu.LoweringException):
        # pipeline_mode / pl.Buffered(1) rejected by this JAX build: retry with
        # default (double-buffered) param specs at a tile re-derived for the
        # doubled param footprint — never at a higher-VMEM configuration.
        fb_tile = _choose_batch_tile(B, D, 2 * param_bytes, budget, out_itemsize)
        return run(min(fb_tile, batch_tile), single_buffer=False)


# --------------------------------------------------------------------------- #
# Parameters
# --------------------------------------------------------------------------- #
def init_params(key, input_size, hidden_size, output_size):
    """nn.Linear-style init (uniform +/- 1/sqrt(fan_in)).  Weights stored
    pre-transposed as (in_features, out_features); biases as (1, out)."""
    dims = [
        (input_size, hidden_size),          # encoder L1
        (hidden_size, hidden_size // 4),    # encoder L2
        (hidden_size // 4, output_size),    # encoder L3
        (output_size, hidden_size // 4),    # decoder L1
        (hidden_size // 4, hidden_size),    # decoder L2
        (hidden_size, input_size),          # decoder L3
    ]
    params = {}
    for idx, (fan_in, fan_out) in enumerate(dims, start=1):
        key, kw, kb = jax.random.split(key, 3)
        bound = 1.0 / math.sqrt(fan_in)
        params[f"w{idx}"] = jax.random.uniform(
            kw, (fan_in, fan_out), jnp.float32, minval=-bound, maxval=bound)
        params[f"b{idx}"] = jax.random.uniform(
            kb, (1, fan_out), jnp.float32, minval=-bound, maxval=bound)
    return params


def prepare_params(params):
    """Kernel-side parameter layout:
      * weights -> bfloat16 (halves HBM weight stream / VMEM residency),
      * biases  -> float32 (epilogue stays f32),
      * internal feature dims zero-padded to multiples of 128 so the middle
        matmuls, bias adds and ReLUs are lane-dense.  Zero padding is exact
        through every ReLU layer; the first layer's input dim and the last
        layer's output dim are left unpadded (no sigmoid(0)=0.5 artefacts).
    """
    prepared = {}
    for idx in range(1, 7):
        w = params[f"w{idx}"]
        b = params[f"b{idx}"]
        fan_in, fan_out = w.shape
        in_pad = fan_in if idx == 1 else _round_up(fan_in, LANE)
        out_pad = fan_out if idx == 6 else _round_up(fan_out, LANE)
        w = jnp.pad(w, ((0, in_pad - fan_in), (0, out_pad - fan_out)))
        b = jnp.pad(b, ((0, 0), (0, out_pad - fan_out)))
        prepared[f"w{idx}"] = w.astype(jnp.bfloat16)
        prepared[f"b{idx}"] = b.astype(jnp.float32)
    return prepared


def reference_forward(x, params):
    """Pure-JAX reference with the same core numerics as the kernel (bf16
    matmul inputs, f32 accumulation, f32 epilogue), unpadded params."""
    def linear(h, w, b):
        return jnp.dot(h.astype(jnp.bfloat16), w.astype(jnp.bfloat16),
                       preferred_element_type=jnp.float32) + b
    h = x
    h = jnp.maximum(linear(h, params["w1"], params["b1"]), 0.0)
    h = jnp.maximum(linear(h, params["w2"], params["b2"]), 0.0)
    h = jnp.maximum(linear(h, params["w3"], params["b3"]), 0.0)
    h = jnp.maximum(linear(h, params["w4"], params["b4"]), 0.0)
    h = jnp.maximum(linear(h, params["w5"], params["b5"]), 0.0)
    return jax.nn.sigmoid(linear(h, params["w6"], params["b6"]))


# --------------------------------------------------------------------------- #
# Demo / correctness check
# --------------------------------------------------------------------------- #
if __name__ == "__main__":
    # Small shapes consistent with the module (full size: D=10000, H=200, O=25).
    input_size = 256
    hidden_size = 32     # hidden_size // 4 == 8
    output_size = 16
    batch = 16

    key = jax.random.PRNGKey(0)
    key, kx = jax.random.split(key)
    x = jax.random.normal(kx, (batch, input_size), jnp.float32)

    params = init_params(key, input_size, hidden_size, output_size)
    prepared = prepare_params(params)

    # Auto tile chooser: at this size it picks 8 rows -> 2-step grid, which
    # exercises the I/O pipeline and (on v7x) two-TensorCore sharding.
    out = sentiment_autoencoder_forward(x, prepared)
    out = jax.block_until_ready(out)

    ref = reference_forward(x, params)
    assert out.shape == (batch, input_size)
    err = jnp.max(jnp.abs(out.astype(jnp.float32) - ref))
    # bf16 output rounding of values in [0,1]: abs error <~ 4e-3.
    assert jnp.allclose(out.astype(jnp.float32), ref, atol=1e-2, rtol=1e-2), (
        f"mismatch vs reference: max abs err {err:.3e}")

    print("KERNEL_OK")
</pallas_src>

<mosaic_0001>
module attributes {stable_mosaic.version = 11 : i64} {
  func.func @autoencoder_kernel(%arg0: i32, %arg1: memref<8x256xbf16, #tpu.memory_space<vmem>>, %arg2: memref<256x128xbf16, #tpu.memory_space<vmem>>, %arg3: memref<1x128xf32, #tpu.memory_space<vmem>>, %arg4: memref<128x128xbf16, #tpu.memory_space<vmem>>, %arg5: memref<1x128xf32, #tpu.memory_space<vmem>>, %arg6: memref<128x128xbf16, #tpu.memory_space<vmem>>, %arg7: memref<1x128xf32, #tpu.memory_space<vmem>>, %arg8: memref<128x128xbf16, #tpu.memory_space<vmem>>, %arg9: memref<1x128xf32, #tpu.memory_space<vmem>>, %arg10: memref<128x128xbf16, #tpu.memory_space<vmem>>, %arg11: memref<1x128xf32, #tpu.memory_space<vmem>>, %arg12: memref<128x256xbf16, #tpu.memory_space<vmem>>, %arg13: memref<1x256xf32, #tpu.memory_space<vmem>>, %arg14: memref<8x256xbf16, #tpu.memory_space<vmem>>) attributes {dimension_semantics = [#tpu.dimension_semantics<parallel>], iteration_bounds = array<i64: 2>, scalar_prefetch = 0 : i64, scratch_operands = 0 : i64, tpu.core_type = #tpu.core_type<tc>, window_params = [{transform_indices = @transform_0, window_bounds = array<i64: 8, 256>}, {pipeline_mode = #tpu.pipeline_mode<synchronous>, transform_indices = @transform_1, window_bounds = array<i64: 256, 128>}, {pipeline_mode = #tpu.pipeline_mode<synchronous>, transform_indices = @transform_2, window_bounds = array<i64: 1, 128>}, {pipeline_mode = #tpu.pipeline_mode<synchronous>, transform_indices = @transform_3, window_bounds = array<i64: 128, 128>}, {pipeline_mode = #tpu.pipeline_mode<synchronous>, transform_indices = @transform_4, window_bounds = array<i64: 1, 128>}, {pipeline_mode = #tpu.pipeline_mode<synchronous>, transform_indices = @transform_5, window_bounds = array<i64: 128, 128>}, {pipeline_mode = #tpu.pipeline_mode<synchronous>, transform_indices = @transform_6, window_bounds = array<i64: 1, 128>}, {pipeline_mode = #tpu.pipeline_mode<synchronous>, transform_indices = @transform_7, window_bounds = array<i64: 128, 128>}, {pipeline_mode = #tpu.pipeline_mode<synchronous>, transform_indices = @transform_8, window_bounds = array<i64: 1, 128>}, {pipeline_mode = #tpu.pipeline_mode<synchronous>, transform_indices = @transform_9, window_bounds = array<i64: 128, 128>}, {pipeline_mode = #tpu.pipeline_mode<synchronous>, transform_indices = @transform_10, window_bounds = array<i64: 1, 128>}, {pipeline_mode = #tpu.pipeline_mode<synchronous>, transform_indices = @transform_11, window_bounds = array<i64: 128, 256>}, {pipeline_mode = #tpu.pipeline_mode<synchronous>, transform_indices = @transform_12, window_bounds = array<i64: 1, 256>}, {transform_indices = @transform_13, window_bounds = array<i64: 8, 256>}]} {
    %c0 = arith.constant 0 : index
    %c0_0 = arith.constant 0 : index
    %0 = vector.load %arg1[%c0, %c0_0] : memref<8x256xbf16, #tpu.memory_space<vmem>>, vector<8x256xbf16>
    %c0_1 = arith.constant 0 : index
    %c0_2 = arith.constant 0 : index
    %1 = vector.load %arg2[%c0_1, %c0_2] : memref<256x128xbf16, #tpu.memory_space<vmem>>, vector<256x128xbf16>
    %cst = arith.constant dense<0.000000e+00> : vector<8x128xf32>
    %2 = tpu.matmul %0, %1, %cst {dimension_numbers = #tpu.dot_dimension_numbers<[1], [0], [0], [1], [0, 0, 1, 1], [], []>} : vector<8x256xbf16>, vector<256x128xbf16>, vector<8x128xf32> -> vector<8x128xf32>
    %c0_3 = arith.constant 0 : index
    %c0_4 = arith.constant 0 : index
    %3 = vector.load %arg3[%c0_3, %c0_4] : memref<1x128xf32, #tpu.memory_space<vmem>>, vector<1x128xf32>
    %4 = vector.broadcast %3 : vector<1x128xf32> to vector<8x128xf32>
    %5 = arith.addf %2, %4 : vector<8x128xf32>
    %cst_5 = arith.constant 0.000000e+00 : f32
    %6 = vector.broadcast %cst_5 : f32 to vector<8x128xf32>
    %7 = arith.maximumf %5, %6 : vector<8x128xf32>
    %8 = arith.truncf %7 : vector<8x128xf32> to vector<8x128xbf16>
    %c0_6 = arith.constant 0 : index
    %c0_7 = arith.constant 0 : index
    %9 = vector.load %arg4[%c0_6, %c0_7] : memref<128x128xbf16, #tpu.memory_space<vmem>>, vector<128x128xbf16>
    %cst_8 = arith.constant dense<0.000000e+00> : vector<8x128xf32>
    %10 = tpu.matmul %8, %9, %cst_8 {dimension_numbers = #tpu.dot_dimension_numbers<[1], [0], [0], [1], [0, 0, 1, 1], [], []>} : vector<8x128xbf16>, vector<128x128xbf16>, vector<8x128xf32> -> vector<8x128xf32>
    %c0_9 = arith.constant 0 : index
    %c0_10 = arith.constant 0 : index
    %11 = vector.load %arg5[%c0_9, %c0_10] : memref<1x128xf32, #tpu.memory_space<vmem>>, vector<1x128xf32>
    %12 = vector.broadcast %11 : vector<1x128xf32> to vector<8x128xf32>
    %13 = arith.addf %10, %12 : vector<8x128xf32>
    %cst_11 = arith.constant 0.000000e+00 : f32
    %14 = vector.broadcast %cst_11 : f32 to vector<8x128xf32>
    %15 = arith.maximumf %13, %14 : vector<8x128xf32>
    %16 = arith.truncf %15 : vector<8x128xf32> to vector<8x128xbf16>
    %c0_12 = arith.constant 0 : index
    %c0_13 = arith.constant 0 : index
    %17 = vector.load %arg6[%c0_12, %c0_13] : memref<128x128xbf16, #tpu.memory_space<vmem>>, vector<128x128xbf16>
    %cst_14 = arith.constant dense<0.000000e+00> : vector<8x128xf32>
    %18 = tpu.matmul %16, %17, %cst_14 {dimension_numbers = #tpu.dot_dimension_numbers<[1], [0], [0], [1], [0, 0, 1, 1], [], []>} : vector<8x128xbf16>, vector<128x128xbf16>, vector<8x128xf32> -> vector<8x128xf32>
    %c0_15 = arith.constant 0 : index
    %c0_16 = arith.constant 0 : index
    %19 = vector.load %arg7[%c0_15, %c0_16] : memref<1x128xf32, #tpu.memory_space<vmem>>, vector<1x128xf32>
    %20 = vector.broadcast %19 : vector<1x128xf32> to vector<8x128xf32>
    %21 = arith.addf %18, %20 : vector<8x128xf32>
    %cst_17 = arith.constant 0.000000e+00 : f32
    %22 = vector.broadcast %cst_17 : f32 to vector<8x128xf32>
    %23 = arith.maximumf %21, %22 : vector<8x128xf32>
    %24 = arith.truncf %23 : vector<8x128xf32> to vector<8x128xbf16>
    %c0_18 = arith.constant 0 : index
    %c0_19 = arith.constant 0 : index
    %25 = vector.load %arg8[%c0_18, %c0_19] : memref<128x128xbf16, #tpu.memory_space<vmem>>, vector<128x128xbf16>
    %cst_20 = arith.constant dense<0.000000e+00> : vector<8x128xf32>
    %26 = tpu.matmul %24, %25, %cst_20 {dimension_numbers = #tpu.dot_dimension_numbers<[1], [0], [0], [1], [0, 0, 1, 1], [], []>} : vector<8x128xbf16>, vector<128x128xbf16>, vector<8x128xf32> -> vector<8x128xf32>
    %c0_21 = arith.constant 0 : index
    %c0_22 = arith.constant 0 : index
    %27 = vector.load %arg9[%c0_21, %c0_22] : memref<1x128xf32, #tpu.memory_space<vmem>>, vector<1x128xf32>
    %28 = vector.broadcast %27 : vector<1x128xf32> to vector<8x128xf32>
    %29 = arith.addf %26, %28 : vector<8x128xf32>
    %cst_23 = arith.constant 0.000000e+00 : f32
    %30 = vector.broadcast %cst_23 : f32 to vector<8x128xf32>
    %31 = arith.maximumf %29, %30 : vector<8x128xf32>
    %32 = arith.truncf %31 : vector<8x128xf32> to vector<8x128xbf16>
    %c0_24 = arith.constant 0 : index
    %c0_25 = arith.constant 0 : index
    %33 = vector.load %arg10[%c0_24, %c0_25] : memref<128x128xbf16, #tpu.memory_space<vmem>>, vector<128x128xbf16>
    %cst_26 = arith.constant dense<0.000000e+00> : vector<8x128xf32>
    %34 = tpu.matmul %32, %33, %cst_26 {dimension_numbers = #tpu.dot_dimension_numbers<[1], [0], [0], [1], [0, 0, 1, 1], [], []>} : vector<8x128xbf16>, vector<128x128xbf16>, vector<8x128xf32> -> vector<8x128xf32>
    %c0_27 = arith.constant 0 : index
    %c0_28 = arith.constant 0 : index
    %35 = vector.load %arg11[%c0_27, %c0_28] : memref<1x128xf32, #tpu.memory_space<vmem>>, vector<1x128xf32>
    %36 = vector.broadcast %35 : vector<1x128xf32> to vector<8x128xf32>
    %37 = arith.addf %34, %36 : vector<8x128xf32>
    %cst_29 = arith.constant 0.000000e+00 : f32
    %38 = vector.broadcast %cst_29 : f32 to vector<8x128xf32>
    %39 = arith.maximumf %37, %38 : vector<8x128xf32>
    %40 = arith.truncf %39 : vector<8x128xf32> to vector<8x128xbf16>
    %c0_30 = arith.constant 0 : index
    %c0_31 = arith.constant 0 : index
    %41 = vector.load %arg12[%c0_30, %c0_31] : memref<128x256xbf16, #tpu.memory_space<vmem>>, vector<128x256xbf16>
    %cst_32 = arith.constant dense<0.000000e+00> : vector<8x256xf32>
    %42 = tpu.matmul %40, %41, %cst_32 {dimension_numbers = #tpu.dot_dimension_numbers<[1], [0], [0], [1], [0, 0, 1, 1], [], []>} : vector<8x128xbf16>, vector<128x256xbf16>, vector<8x256xf32> -> vector<8x256xf32>
    %c0_33 = arith.constant 0 : index
    %c0_34 = arith.constant 0 : index
    %43 = vector.load %arg13[%c0_33, %c0_34] : memref<1x256xf32, #tpu.memory_space<vmem>>, vector<1x256xf32>
    %44 = vector.broadcast %43 : vector<1x256xf32> to vector<8x256xf32>
    %45 = arith.addf %42, %44 : vector<8x256xf32>
    %cst_35 = arith.constant 5.000000e-01 : f32
    %46 = vector.broadcast %cst_35 : f32 to vector<8x256xf32>
    %47 = arith.mulf %46, %45 : vector<8x256xf32>
    %48 = math.tanh %47 : vector<8x256xf32>
    %cst_36 = arith.constant 1.000000e+00 : f32
    %49 = vector.broadcast %cst_36 : f32 to vector<8x256xf32>
    %50 = arith.addf %48, %49 : vector<8x256xf32>
    %cst_37 = arith.constant 5.000000e-01 : f32
    %51 = vector.broadcast %cst_37 : f32 to vector<8x256xf32>
    %52 = arith.mulf %51, %50 : vector<8x256xf32>
    %53 = arith.truncf %52 : vector<8x256xf32> to vector<8x256xbf16>
    %c0_38 = arith.constant 0 : index
    %c0_39 = arith.constant 0 : index
    %54 = vector.load %arg14[%c0_38, %c0_39] : memref<8x256xbf16, #tpu.memory_space<vmem>>, vector<8x256xbf16>
    tpu.vector_store %arg14[%c0_38, %c0_39], %53 {strides = array<i32>} : memref<8x256xbf16, #tpu.memory_space<vmem>>, vector<8x256xbf16>,
    return
  }
  func.func @transform_0(%arg0: i32) -> (i32, i32) {
    %c0_i32 = arith.constant 0 : i32
    %c0_i32_0 = arith.constant 0 : i32
    return %arg0, %c0_i32 : i32, i32
  }
  func.func @transform_1(%arg0: i32) -> (i32, i32) {
    %c0_i32 = arith.constant 0 : i32
    %c0_i32_0 = arith.constant 0 : i32
    %c0_i32_1 = arith.constant 0 : i32
    return %c0_i32, %c0_i32_0 : i32, i32
  }
  func.func @transform_2(%arg0: i32) -> (i32, i32) {
    %c0_i32 = arith.constant 0 : i32
    %c0_i32_0 = arith.constant 0 : i32
    %c0_i32_1 = arith.constant 0 : i32
    return %c0_i32, %c0_i32_0 : i32, i32
  }
  func.func @transform_3(%arg0: i32) -> (i32, i32) {
    %c0_i32 = arith.constant 0 : i32
    %c0_i32_0 = arith.constant 0 : i32
    %c0_i32_1 = arith.constant 0 : i32
    return %c0_i32, %c0_i32_0 : i32, i32
  }
  func.func @transform_4(%arg0: i32) -> (i32, i32) {
    %c0_i32 = arith.constant 0 : i32
    %c0_i32_0 = arith.constant 0 : i32
    %c0_i32_1 = arith.constant 0 : i32
    return %c0_i32, %c0_i32_0 : i32, i32
  }
  func.func @transform_5(%arg0: i32) -> (i32, i32) {
    %c0_i32 = arith.constant 0 : i32
    %c0_i32_0 = arith.constant 0 : i32
    %c0_i32_1 = arith.constant 0 : i32
    return %c0_i32, %c0_i32_0 : i32, i32
  }
  func.func @transform_6(%arg0: i32) -> (i32, i32) {
    %c0_i32 = arith.constant 0 : i32
    %c0_i32_0 = arith.constant 0 : i32
    %c0_i32_1 = arith.constant 0 : i32
    return %c0_i32, %c0_i32_0 : i32, i32
  }
  func.func @transform_7(%arg0: i32) -> (i32, i32) {
    %c0_i32 = arith.constant 0 : i32
    %c0_i32_0 = arith.constant 0 : i32
    %c0_i32_1 = arith.constant 0 : i32
    return %c0_i32, %c0_i32_0 : i32, i32
  }
  func.func @transform_8(%arg0: i32) -> (i32, i32) {
    %c0_i32 = arith.constant 0 : i32
    %c0_i32_0 = arith.constant 0 : i32
    %c0_i32_1 = arith.constant 0 : i32
    return %c0_i32, %c0_i32_0 : i32, i32
  }
  func.func @transform_9(%arg0: i32) -> (i32, i32) {
    %c0_i32 = arith.constant 0 : i32
    %c0_i32_0 = arith.constant 0 : i32
    %c0_i32_1 = arith.constant 0 : i32
    return %c0_i32, %c0_i32_0 : i32, i32
  }
  func.func @transform_10(%arg0: i32) -> (i32, i32) {
    %c0_i32 = arith.constant 0 : i32
    %c0_i32_0 = arith.constant 0 : i32
    %c0_i32_1 = arith.constant 0 : i32
    return %c0_i32, %c0_i32_0 : i32, i32
  }
  func.func @transform_11(%arg0: i32) -> (i32, i32) {
    %c0_i32 = arith.constant 0 : i32
    %c0_i32_0 = arith.constant 0 : i32
    %c0_i32_1 = arith.constant 0 : i32
    return %c0_i32, %c0_i32_0 : i32, i32
  }
  func.func @transform_12(%arg0: i32) -> (i32, i32) {
    %c0_i32 = arith.constant 0 : i32
    %c0_i32_0 = arith.constant 0 : i32
    %c0_i32_1 = arith.constant 0 : i32
    return %c0_i32, %c0_i32_0 : i32, i32
  }
  func.func @transform_13(%arg0: i32) -> (i32, i32) {
    %c0_i32 = arith.constant 0 : i32
    %c0_i32_0 = arith.constant 0 : i32
    return %arg0, %c0_i32 : i32, i32
  }
}

</mosaic_0001>

<llo_original>
// kernel: tpu_custom_call.1
$region0: #{tpu_custom_call.1}
  #allocation0 [shape = 'u32[]', space=smem, size = 0x4, offset = 0x4, fixed_abs, tag = 'smem constant byte address 0x4 - core index']
  #allocation1 [shape = 'u32[144,128]{1,0:T(1,128)}', space=vmem, size = 0x12000, scoped, tag = 'internal scratch']
  %s0 = inlined_call_operand.hbm [shape: bf16[16,256], index: 0, kind: input, shape index: {}]
  %s1 = inlined_call_operand.hbm [shape: bf16[256,128], index: 1, kind: input, shape index: {}]
  %s2 = inlined_call_operand.vmem [shape: f32[1,128], index: 2, kind: input, shape index: {}]
  %s3 = inlined_call_operand.hbm [shape: bf16[128,128], index: 3, kind: input, shape index: {}]
  %s4 = inlined_call_operand.vmem [shape: f32[1,128], index: 4, kind: input, shape index: {}]
  %s5 = inlined_call_operand.hbm [shape: bf16[128,128], index: 5, kind: input, shape index: {}]
  %s6 = inlined_call_operand.vmem [shape: f32[1,128], index: 6, kind: input, shape index: {}]
  %s7 = inlined_call_operand.hbm [shape: bf16[128,128], index: 7, kind: input, shape index: {}]
  %s8 = inlined_call_operand.vmem [shape: f32[1,128], index: 8, kind: input, shape index: {}]
  %s9 = inlined_call_operand.hbm [shape: bf16[128,128], index: 9, kind: input, shape index: {}]
  %s10 = inlined_call_operand.vmem [shape: f32[1,128], index: 10, kind: input, shape index: {}]
  %s11 = inlined_call_operand.hbm [shape: bf16[128,256], index: 11, kind: input, shape index: {}]
  %s12 = inlined_call_operand.vmem [shape: f32[1,256], index: 12, kind: input, shape index: {}]
  %s13 = inlined_call_operand.hbm [shape: bf16[16,256], index: 13, kind: output, shape index: {}]
  %s14 = sld [smem:[#allocation0]]
  $region113: #{tpu_custom_call.1} parent=0
    _
  %s16 = ssub.s32 1, %s14
  %s17 = scalar_select 0, %s16, %s14
  $region1: #{tpu_custom_call.1} parent=0
    #allocation2 [shape = 'u8[8192]{0}', space=vmem, size = 0x2000, scoped, tag = 'input window, operand 0']
    #allocation3 [shape = 's32[2]{0}', space=sflag, size = 0x8, scoped, tag = 'scoped memory for tpu_custom_call.1']
    #allocation4 [shape = 's32[2]{0}', space=sflag, size = 0x8, scoped, tag = 'scoped memory for tpu_custom_call.1']
    #allocation5 [shape = 'u8[65536]{0}', space=vmem, size = 0x10000, scoped, tag = 'input window, operand 1, single buffered']
    #allocation6 [shape = 's32[1]{0}', space=sflag, size = 0x4, scoped, tag = 'scoped memory for tpu_custom_call.1']
    #allocation7 [shape = 'u8[32768]{0}', space=vmem, size = 0x8000, scoped, tag = 'input window, operand 3, single buffered']
    #allocation8 [shape = 'u8[32768]{0}', space=vmem, size = 0x8000, scoped, tag = 'input window, operand 5, single buffered']
    #allocation9 [shape = 's32[1]{0}', space=sflag, size = 0x4, scoped, tag = 'scoped memory for tpu_custom_call.1']
    #allocation10 [shape = 'u8[32768]{0}', space=vmem, size = 0x8000, scoped, tag = 'input window, operand 7, single buffered']
    #allocation11 [shape = 'u8[32768]{0}', space=vmem, size = 0x8000, scoped, tag = 'input window, operand 9, single buffered']
    #allocation12 [shape = 's32[1]{0}', space=sflag, size = 0x4, scoped, tag = 'scoped memory for tpu_custom_call.1']
    #allocation13 [shape = 'u8[65536]{0}', space=vmem, size = 0x10000, scoped, tag = 'input window, operand 11, single buffered']
    #allocation14 [shape = 'u8[8192]{0}', space=vmem, size = 0x2000, scoped, tag = 'output window, operand 0']
    %18 = vsyncpa [#allocation3], 0
    %s19 = scalar_lea.sflag [#allocation3], 1
    %20 = vsyncpa %s19, 0
    %21 = vsyncpa [#allocation6], 0
    %22 = vsyncpa [#allocation9], 0
    %23 = vsyncpa [#allocation12], 0
    %24 = vsyncpa [#allocation4], 0
    %s25 = scalar_lea.sflag [#allocation4], 1
    %26 = vsyncpa %s25, 0
    loop: start=0, step=1, limit=4
    $region2: #{tpu_custom_call.1} parent=1 // loop_pre_header
      _
    $region3: #{tpu_custom_call.1} parent=1 // loop_header
      %s28 = sphi 0, %s32
      %p29 = scmp.ge.s32.totalorder %s28, 4
      %s38 = sphi 0, %s40
      %s41 = sphi 0, %s38
      %s42 = sphi 0, %s41
      %s58 = sphi 0, %s42
      %s62 = sphi 0, %s62
      %s64 = sphi 0, %s62
      %s65 = sphi 0, %s64
      %s79 = sphi 0, %s65
      %s83 = sphi 0, %s83
      %s85 = sphi 0, %s83
      %s86 = sphi 0, %s85
      %s100 = sphi 0, %s86
      %s104 = sphi 0, %s104
      %s106 = sphi 0, %s104
      %s107 = sphi 0, %s106
      %s121 = sphi 0, %s107
      %s125 = sphi 0, %s125
      %s127 = sphi 0, %s125
      %s128 = sphi 0, %s127
      %s142 = sphi 0, %s128
      %s146 = sphi 0, %s146
      %s148 = sphi 0, %s146
      %s149 = sphi 0, %s148
      %s163 = sphi 0, %s149
      %s167 = sphi 0, %s167
      %s169 = sphi 0, %s167
      %s170 = sphi 0, %s169
      %s184 = sphi 0, %s170
      %s188 = sphi 0, %s188
      %s190 = sphi 0, %s188
      %s191 = sphi 0, %s190
      %s205 = sphi 0, %s191
      %s209 = sphi 0, %s209
      %s211 = sphi 0, %s209
      %s212 = sphi 0, %s211
      %s226 = sphi 0, %s212
      %s230 = sphi 0, %s230
      %s232 = sphi 0, %s230
      %s233 = sphi 0, %s232
      %s247 = sphi 0, %s233
      %s251 = sphi 0, %s251
      %s253 = sphi 0, %s251
      %s254 = sphi 0, %s253
      %s268 = sphi 0, %s254
      %s272 = sphi 0, %s272
      %s274 = sphi 0, %s272
      %s275 = sphi 0, %s274
      %s289 = sphi 0, %s275
      %s293 = sphi 0, %s293
      %s295 = sphi 0, %s293
      %s296 = sphi 0, %s295
      %s310 = sphi 0, %s296
      %s316 = sphi 0, %s318
      %s319 = sphi 0, %s316
      %s320 = sphi 0, %s319
      %s336 = sphi 0, %s320
    $region4: #{tpu_custom_call.1} parent=1 // loop_header_branch
      %31 = sbr.rel (%p29) target = $region8
    $region5: #{tpu_custom_call.1} parent=1 // loop_body
      %s33 = ssub.s32 %s28, 1
      %s34 = ssub.s32 %s28, 2
      %s35 = sadd.s32 %s28, 1
      %s36 = ssub.s32 %s28, %s35
      %p37 = scmp.eq.s32.totalorder %s36, 0
      %s39 = sadd.s32 %s38, 1
      %s40 = scalar_select %p37, %s38, %s39
      %p43 = pneg %p37
      %p44 = scmp.eq.s32.totalorder %s28, 1
      %p45 = por %p43, %p44
      %p46 = scmp.ne.s32.totalorder %s38, %s41
      %p47 = scmp.eq.s32.totalorder %s28, 0
      %p48 = por %p46, %p47
      %p49 = scmp.ne.s32.totalorder %s38, %s41
      %p50 = scmp.eq.s32.totalorder %s33, 1
      %p51 = por %p49, %p50
      %p52 = scmp.ne.s32.totalorder %s41, %s42
      %p53 = scmp.eq.s32.totalorder %s33, 0
      %p54 = por %p52, %p53
      %p55 = scmp.ne.s32.totalorder %s41, %s42
      %p56 = scmp.eq.s32.totalorder %s34, 1
      %p57 = por %p55, %p56
      %p59 = scmp.ne.s32.totalorder %s42, %s58
      %p60 = scmp.eq.s32.totalorder %s34, 0
      %p61 = por %p59, %p60
      %s63 = sadd.s32 %s62, 1
      %p66 = scmp.eq.s32.totalorder %s28, 1
      %p67 = scmp.ne.s32.totalorder %s62, %s64
      %p68 = scmp.eq.s32.totalorder %s28, 0
      %p69 = por %p67, %p68
      %p70 = scmp.ne.s32.totalorder %s62, %s64
      %p71 = scmp.eq.s32.totalorder %s33, 1
      %p72 = por %p70, %p71
      %p73 = scmp.ne.s32.totalorder %s64, %s65
      %p74 = scmp.eq.s32.totalorder %s33, 0
      %p75 = por %p73, %p74
      %p76 = scmp.ne.s32.totalorder %s64, %s65
      %p77 = scmp.eq.s32.totalorder %s34, 1
      %p78 = por %p76, %p77
      %p80 = scmp.ne.s32.totalorder %s65, %s79
      %p81 = scmp.eq.s32.totalorder %s34, 0
      %p82 = por %p80, %p81
      %s84 = sadd.s32 %s83, 1
      %p87 = scmp.eq.s32.totalorder %s28, 1
      %p88 = scmp.ne.s32.totalorder %s83, %s85
      %p89 = scmp.eq.s32.totalorder %s28, 0
      %p90 = por %p88, %p89
      %p91 = scmp.ne.s32.totalorder %s83, %s85
      %p92 = scmp.eq.s32.totalorder %s33, 1
      %p93 = por %p91, %p92
      %p94 = scmp.ne.s32.totalorder %s85, %s86
      %p95 = scmp.eq.s32.totalorder %s33, 0
      %p96 = por %p94, %p95
      %p97 = scmp.ne.s32.totalorder %s85, %s86
      %p98 = scmp.eq.s32.totalorder %s34, 1
      %p99 = por %p97, %p98
      %p101 = scmp.ne.s32.totalorder %s86, %s100
      %p102 = scmp.eq.s32.totalorder %s34, 0
      %p103 = por %p101, %p102
      %s105 = sadd.s32 %s104, 1
      %p108 = scmp.eq.s32.totalorder %s28, 1
      %p109 = scmp.ne.s32.totalorder %s104, %s106
      %p110 = scmp.eq.s32.totalorder %s28, 0
      %p111 = por %p109, %p110
      %p112 = scmp.ne.s32.totalorder %s104, %s106
      %p113 = scmp.eq.s32.totalorder %s33, 1
      %p114 = por %p112, %p113
      %p115 = scmp.ne.s32.totalorder %s106, %s107
      %p116 = scmp.eq.s32.totalorder %s33, 0
      %p117 = por %p115, %p116
      %p118 = scmp.ne.s32.totalorder %s106, %s107
      %p119 = scmp.eq.s32.totalorder %s34, 1
      %p120 = por %p118, %p119
      %p122 = scmp.ne.s32.totalorder %s107, %s121
      %p123 = scmp.eq.s32.totalorder %s34, 0
      %p124 = por %p122, %p123
      %s126 = sadd.s32 %s125, 1
      %p129 = scmp.eq.s32.totalorder %s28, 1
      %p130 = scmp.ne.s32.totalorder %s125, %s127
      %p131 = scmp.eq.s32.totalorder %s28, 0
      %p132 = por %p130, %p131
      %p133 = scmp.ne.s32.totalorder %s125, %s127
      %p134 = scmp.eq.s32.totalorder %s33, 1
      %p135 = por %p133, %p134
      %p136 = scmp.ne.s32.totalorder %s127, %s128
      %p137 = scmp.eq.s32.totalorder %s33, 0
      %p138 = por %p136, %p137
      %p139 = scmp.ne.s32.totalorder %s127, %s128
      %p140 = scmp.eq.s32.totalorder %s34, 1
      %p141 = por %p139, %p140
      %p143 = scmp.ne.s32.totalorder %s128, %s142
      %p144 = scmp.eq.s32.totalorder %s34, 0
      %p145 = por %p143, %p144
      %s147 = sadd.s32 %s146, 1
      %p150 = scmp.eq.s32.totalorder %s28, 1
      %p151 = scmp.ne.s32.totalorder %s146, %s148
      %p152 = scmp.eq.s32.totalorder %s28, 0
      %p153 = por %p151, %p152
      %p154 = scmp.ne.s32.totalorder %s146, %s148
      %p155 = scmp.eq.s32.totalorder %s33, 1
      %p156 = por %p154, %p155
      %p157 = scmp.ne.s32.totalorder %s148, %s149
      %p158 = scmp.eq.s32.totalorder %s33, 0
      %p159 = por %p157, %p158
      %p160 = scmp.ne.s32.totalorder %s148, %s149
      %p161 = scmp.eq.s32.totalorder %s34, 1
      %p162 = por %p160, %p161
      %p164 = scmp.ne.s32.totalorder %s149, %s163
      %p165 = scmp.eq.s32.totalorder %s34, 0
      %p166 = por %p164, %p165
      %s168 = sadd.s32 %s167, 1
      %p171 = scmp.eq.s32.totalorder %s28, 1
      %p172 = scmp.ne.s32.totalorder %s167, %s169
      %p173 = scmp.eq.s32.totalorder %s28, 0
      %p174 = por %p172, %p173
      %p175 = scmp.ne.s32.totalorder %s167, %s169
      %p176 = scmp.eq.s32.totalorder %s33, 1
      %p177 = por %p175, %p176
      %p178 = scmp.ne.s32.totalorder %s169, %s170
      %p179 = scmp.eq.s32.totalorder %s33, 0
      %p180 = por %p178, %p179
      %p181 = scmp.ne.s32.totalorder %s169, %s170
      %p182 = scmp.eq.s32.totalorder %s34, 1
      %p183 = por %p181, %p182
      %p185 = scmp.ne.s32.totalorder %s170, %s184
      %p186 = scmp.eq.s32.totalorder %s34, 0
      %p187 = por %p185, %p186
      %s189 = sadd.s32 %s188, 1
      %p192 = scmp.eq.s32.totalorder %s28, 1
      %p193 = scmp.ne.s32.totalorder %s188, %s190
      %p194 = scmp.eq.s32.totalorder %s28, 0
      %p195 = por %p193, %p194
      %p196 = scmp.ne.s32.totalorder %s188, %s190
      %p197 = scmp.eq.s32.totalorder %s33, 1
      %p198 = por %p196, %p197
      %p199 = scmp.ne.s32.totalorder %s190, %s191
      %p200 = scmp.eq.s32.totalorder %s33, 0
      %p201 = por %p199, %p200
      %p202 = scmp.ne.s32.totalorder %s190, %s191
      %p203 = scmp.eq.s32.totalorder %s34, 1
      %p204 = por %p202, %p203
      %p206 = scmp.ne.s32.totalorder %s191, %s205
      %p207 = scmp.eq.s32.totalorder %s34, 0
      %p208 = por %p206, %p207
      %s210 = sadd.s32 %s209, 1
      %p213 = scmp.eq.s32.totalorder %s28, 1
      %p214 = scmp.ne.s32.totalorder %s209, %s211
      %p215 = scmp.eq.s32.totalorder %s28, 0
      %p216 = por %p214, %p215
      %p217 = scmp.ne.s32.totalorder %s209, %s211
      %p218 = scmp.eq.s32.totalorder %s33, 1
      %p219 = por %p217, %p218
      %p220 = scmp.ne.s32.totalorder %s211, %s212
      %p221 = scmp.eq.s32.totalorder %s33, 0
      %p222 = por %p220, %p221
      %p223 = scmp.ne.s32.totalorder %s211, %s212
      %p224 = scmp.eq.s32.totalorder %s34, 1
      %p225 = por %p223, %p224
      %p227 = scmp.ne.s32.totalorder %s212, %s226
      %p228 = scmp.eq.s32.totalorder %s34, 0
      %p229 = por %p227, %p228
      %s231 = sadd.s32 %s230, 1
      %p234 = scmp.eq.s32.totalorder %s28, 1
      %p235 = scmp.ne.s32.totalorder %s230, %s232
      %p236 = scmp.eq.s32.totalorder %s28, 0
      %p237 = por %p235, %p236
      %p238 = scmp.ne.s32.totalorder %s230, %s232
      %p239 = scmp.eq.s32.totalorder %s33, 1
      %p240 = por %p238, %p239
      %p241 = scmp.ne.s32.totalorder %s232, %s233
      %p242 = scmp.eq.s32.totalorder %s33, 0
      %p243 = por %p241, %p242
      %p244 = scmp.ne.s32.totalorder %s232, %s233
      %p245 = scmp.eq.s32.totalorder %s34, 1
      %p246 = por %p244, %p245
      %p248 = scmp.ne.s32.totalorder %s233, %s247
      %p249 = scmp.eq.s32.totalorder %s34, 0
      %p250 = por %p248, %p249
      %s252 = sadd.s32 %s251, 1
      %p255 = scmp.eq.s32.totalorder %s28, 1
      %p256 = scmp.ne.s32.totalorder %s251, %s253
      %p257 = scmp.eq.s32.totalorder %s28, 0
      %p258 = por %p256, %p257
      %p259 = scmp.ne.s32.totalorder %s251, %s253
      %p260 = scmp.eq.s32.totalorder %s33, 1
      %p261 = por %p259, %p260
      %p262 = scmp.ne.s32.totalorder %s253, %s254
      %p263 = scmp.eq.s32.totalorder %s33, 0
      %p264 = por %p262, %p263
      %p265 = scmp.ne.s32.totalorder %s253, %s254
      %p266 = scmp.eq.s32.totalorder %s34, 1
      %p267 = por %p265, %p266
      %p269 = scmp.ne.s32.totalorder %s254, %s268
      %p270 = scmp.eq.s32.totalorder %s34, 0
      %p271 = por %p269, %p270
      %s273 = sadd.s32 %s272, 1
      %p276 = scmp.eq.s32.totalorder %s28, 1
      %p277 = scmp.ne.s32.totalorder %s272, %s274
      %p278 = scmp.eq.s32.totalorder %s28, 0
      %p279 = por %p277, %p278
      %p280 = scmp.ne.s32.totalorder %s272, %s274
      %p281 = scmp.eq.s32.totalorder %s33, 1
      %p282 = por %p280, %p281
      %p283 = scmp.ne.s32.totalorder %s274, %s275
      %p284 = scmp.eq.s32.totalorder %s33, 0
      %p285 = por %p283, %p284
      %p286 = scmp.ne.s32.totalorder %s274, %s275
      %p287 = scmp.eq.s32.totalorder %s34, 1
      %p288 = por %p286, %p287
      %p290 = scmp.ne.s32.totalorder %s275, %s289
      %p291 = scmp.eq.s32.totalorder %s34, 0
      %p292 = por %p290, %p291
      %s294 = sadd.s32 %s293, 1
      %p297 = scmp.eq.s32.totalorder %s28, 1
      %p298 = scmp.ne.s32.totalorder %s293, %s295
      %p299 = scmp.eq.s32.totalorder %s28, 0
      %p300 = por %p298, %p299
      %p301 = scmp.ne.s32.totalorder %s293, %s295
      %p302 = scmp.eq.s32.totalorder %s33, 1
      %p303 = por %p301, %p302
      %p304 = scmp.ne.s32.totalorder %s295, %s296
      %p305 = scmp.eq.s32.totalorder %s33, 0
      %p306 = por %p304, %p305
      %p307 = scmp.ne.s32.totalorder %s295, %s296
      %p308 = scmp.eq.s32.totalorder %s34, 1
      %p309 = por %p307, %p308
      %p311 = scmp.ne.s32.totalorder %s296, %s310
      %p312 = scmp.eq.s32.totalorder %s34, 0
      %p313 = por %p311, %p312
      %s314 = ssub.s32 %s28, %s35
      %p315 = scmp.eq.s32.totalorder %s314, 0
      %s317 = sadd.s32 %s316, 1
      %s318 = scalar_select %p315, %s316, %s317
      %p321 = pneg %p315
      %p322 = scmp.eq.s32.totalorder %s28, 1
      %p323 = por %p321, %p322
      %p324 = scmp.ne.s32.totalorder %s316, %s319
      %p325 = scmp.eq.s32.totalorder %s28, 0
      %p326 = por %p324, %p325
      %p327 = scmp.ne.s32.totalorder %s316, %s319
      %p328 = scmp.eq.s32.totalorder %s33, 1
      %p329 = por %p327, %p328
      %p330 = scmp.ne.s32.totalorder %s319, %s320
      %p331 = scmp.eq.s32.totalorder %s33, 0
      %p332 = por %p330, %p331
      %p333 = scmp.ne.s32.totalorder %s319, %s320
      %p334 = scmp.eq.s32.totalorder %s34, 1
      %p335 = por %p333, %p334
      %p337 = scmp.ne.s32.totalorder %s320, %s336
      %p338 = scmp.eq.s32.totalorder %s34, 0
      %p339 = por %p337, %p338
      %p340 = scmp.le.s32.totalorder 1, %s28
      %p341 = scmp.lt.s32.totalorder %s28, 3
      %p342 = pnand %p340, %p341
      %p343 = pneg %p342
      // Predicated region
      $region9: #{tpu_custom_call.1} parent=5 // pred_check
        _
      $region10: #{tpu_custom_call.1} parent=5 // pred_check_branch
        %345 = sbr.rel (%p342) target = $region12
      $region11: #{tpu_custom_call.1} parent=5 // pred_region
        %s346 = ssub.s32 %s28, 1
        // Predicated region
        $region13: #{tpu_custom_call.1} parent=11 // pred_check
          %p347 = pneg %p75
        $region14: #{tpu_custom_call.1} parent=11 // pred_check_branch
          %349 = sbr.rel (%p347) target = $region16
        $region15: #{tpu_custom_call.1} parent=11 // pred_region
          %s351 = ssub.s32 2048, 2048
          %352 = vsyncadd [#allocation6], %s351
          %s353 = sshll.u32 [#allocation5], 4
          %s354 = int_to_ptr.vmem [resolvable:$true] %s353
          %359 = dma.hbm_to_vmem [thread:$0]  %s1, 2048, %s354, [#allocation6], 64, 64, 4
        $region16: #{tpu_custom_call.1} parent=11 // pred_fallthru
          _
        // Predicated region
        $region17: #{tpu_custom_call.1} parent=11 // pred_check
          %p360 = pneg %p96
        $region18: #{tpu_custom_call.1} parent=11 // pred_check_branch
          %362 = sbr.rel (%p360) target = $region20
        $region19: #{tpu_custom_call.1} parent=11 // pred_region
          _
        $region20: #{tpu_custom_call.1} parent=11 // pred_fallthru
          _
        // Predicated region
        $region21: #{tpu_custom_call.1} parent=11 // pred_check
          %p363 = pneg %p117
        $region22: #{tpu_custom_call.1} parent=11 // pred_check_branch
          %365 = sbr.rel (%p363) target = $region24
        $region23: #{tpu_custom_call.1} parent=11 // pred_region
          %s367 = ssub.s32 1024, 1024
          %368 = vsyncadd [#allocation6], %s367
          %s369 = sshll.u32 [#allocation7], 4
          %s370 = int_to_ptr.vmem [resolvable:$true] %s369
          %375 = dma.hbm_to_vmem [thread:$0]  %s3, 1024, %s370, [#allocation6], 64, 64, 4
        $region24: #{tpu_custom_call.1} parent=11 // pred_fallthru
          _
        // Predicated region
        $region25: #{tpu_custom_call.1} parent=11 // pred_check
          %p376 = pneg %p138
        $region26: #{tpu_custom_call.1} parent=11 // pred_check_branch
          %378 = sbr.rel (%p376) target = $region28
        $region27: #{tpu_custom_call.1} parent=11 // pred_region
          _
        $region28: #{tpu_custom_call.1} parent=11 // pred_fallthru
          _
        // Predicated region
        $region29: #{tpu_custom_call.1} parent=11 // pred_check
          %p379 = pneg %p159
        $region30: #{tpu_custom_call.1} parent=11 // pred_check_branch
          %381 = sbr.rel (%p379) target = $region32
        $region31: #{tpu_custom_call.1} parent=11 // pred_region
          %s383 = ssub.s32 1024, 1024
          %384 = vsyncadd [#allocation9], %s383
          %s385 = sshll.u32 [#allocation8], 4
          %s386 = int_to_ptr.vmem [resolvable:$true] %s385
          %391 = dma.hbm_to_vmem [thread:$0]  %s5, 1024, %s386, [#allocation9], 64, 64, 4
        $region32: #{tpu_custom_call.1} parent=11 // pred_fallthru
          _
        // Predicated region
        $region33: #{tpu_custom_call.1} parent=11 // pred_check
          %p392 = pneg %p180
        $region34: #{tpu_custom_call.1} parent=11 // pred_check_branch
          %394 = sbr.rel (%p392) target = $region36
        $region35: #{tpu_custom_call.1} parent=11 // pred_region
          _
        $region36: #{tpu_custom_call.1} parent=11 // pred_fallthru
          _
        // Predicated region
        $region37: #{tpu_custom_call.1} parent=11 // pred_check
          %p395 = pneg %p201
        $region38: #{tpu_custom_call.1} parent=11 // pred_check_branch
          %397 = sbr.rel (%p395) target = $region40
        $region39: #{tpu_custom_call.1} parent=11 // pred_region
          %s399 = ssub.s32 1024, 1024
          %400 = vsyncadd [#allocation9], %s399
          %s401 = sshll.u32 [#allocation10], 4
          %s402 = int_to_ptr.vmem [resolvable:$true] %s401
          %407 = dma.hbm_to_vmem [thread:$0]  %s7, 1024, %s402, [#allocation9], 64, 64, 4
        $region40: #{tpu_custom_call.1} parent=11 // pred_fallthru
          _
        // Predicated region
        $region41: #{tpu_custom_call.1} parent=11 // pred_check
          %p408 = pneg %p222
        $region42: #{tpu_custom_call.1} parent=11 // pred_check_branch
          %410 = sbr.rel (%p408) target = $region44
        $region43: #{tpu_custom_call.1} parent=11 // pred_region
          _
        $region44: #{tpu_custom_call.1} parent=11 // pred_fallthru
          _
        // Predicated region
        $region45: #{tpu_custom_call.1} parent=11 // pred_check
          %p411 = pneg %p243
        $region46: #{tpu_custom_call.1} parent=11 // pred_check_branch
          %413 = sbr.rel (%p411) target = $region48
        $region47: #{tpu_custom_call.1} parent=11 // pred_region
          %s415 = ssub.s32 1024, 1024
          %416 = vsyncadd [#allocation12], %s415
          %s417 = sshll.u32 [#allocation11], 4
          %s418 = int_to_ptr.vmem [resolvable:$true] %s417
          %423 = dma.hbm_to_vmem [thread:$0]  %s9, 1024, %s418, [#allocation12], 64, 64, 4
        $region48: #{tpu_custom_call.1} parent=11 // pred_fallthru
          _
        // Predicated region
        $region49: #{tpu_custom_call.1} parent=11 // pred_check
          %p424 = pneg %p264
        $region50: #{tpu_custom_call.1} parent=11 // pred_check_branch
          %426 = sbr.rel (%p424) target = $region52
        $region51: #{tpu_custom_call.1} parent=11 // pred_region
          _
        $region52: #{tpu_custom_call.1} parent=11 // pred_fallthru
          _
        // Predicated region
        $region53: #{tpu_custom_call.1} parent=11 // pred_check
          %p427 = pneg %p285
        $region54: #{tpu_custom_call.1} parent=11 // pred_check_branch
          %429 = sbr.rel (%p427) target = $region56
        $region55: #{tpu_custom_call.1} parent=11 // pred_region
          %s431 = ssub.s32 2048, 2048
          %432 = vsyncadd [#allocation12], %s431
          %s433 = sshll.u32 [#allocation13], 4
          %s434 = int_to_ptr.vmem [resolvable:$true] %s433
          %439 = dma.hbm_to_vmem [thread:$0]  %s11, 2048, %s434, [#allocation12], 128, 128, 8
        $region56: #{tpu_custom_call.1} parent=11 // pred_fallthru
          _
        // Predicated region
        $region57: #{tpu_custom_call.1} parent=11 // pred_check
          %p440 = pneg %p306
        $region58: #{tpu_custom_call.1} parent=11 // pred_check_branch
          %442 = sbr.rel (%p440) target = $region60
        $region59: #{tpu_custom_call.1} parent=11 // pred_region
          _
        $region60: #{tpu_custom_call.1} parent=11 // pred_fallthru
          _
      $region12: #{tpu_custom_call.1} parent=5 // pred_fallthru
        _
      %p443 = scmp.lt.s32.totalorder %s28, 2
      // Predicated region
      $region61: #{tpu_custom_call.1} parent=5 // pred_check
        %p444 = pneg %p443
      $region62: #{tpu_custom_call.1} parent=5 // pred_check_branch
        %446 = sbr.rel (%p444) target = $region64
      $region63: #{tpu_custom_call.1} parent=5 // pred_region
        // Predicated region
        $region65: #{tpu_custom_call.1} parent=63 // pred_check
          %p447 = pneg %p48
        $region66: #{tpu_custom_call.1} parent=63 // pred_check_branch
          %449 = sbr.rel (%p447) target = $region68
        $region67: #{tpu_custom_call.1} parent=63 // pred_region
          %s450 = sand.u32 %s38, 1
          %s451 = scalar_lea.sflag [#allocation3], %s450
          %s452 = sand.u32 %s38, 1
          %s453 = smul.addr %s452, 8
          %s454 = scalar_lea.vmem [#allocation2], %s453
          %s456 = ssub.s32 128, 128
          %457 = vsyncadd %s451, %s456
          %s458 = smul.addr %s28, 2
          %s459 = smul.addr %s458, 64
          %s460 = scalar_lea.hbm %s0, %s459
          %s462 = sshll.u32 %s454, 4
          %s463 = int_to_ptr.vmem [resolvable:$true] %s462
          %465 = dma.hbm_to_vmem [thread:$0]  %s460, 128, %s463, %s451
        $region68: #{tpu_custom_call.1} parent=63 // pred_fallthru
          _
      $region64: #{tpu_custom_call.1} parent=5 // pred_fallthru
        _
      %p466 = scmp.le.s32.totalorder 1, %s28
      %p467 = scmp.lt.s32.totalorder %s28, 3
      %p468 = pnand %p466, %p467
      %p469 = pneg %p468
      // Predicated region
      $region69: #{tpu_custom_call.1} parent=5 // pred_check
        _
      $region70: #{tpu_custom_call.1} parent=5 // pred_check_branch
        %471 = sbr.rel (%p468) target = $region72
      $region71: #{tpu_custom_call.1} parent=5 // pred_region
        %s472 = ssub.s32 %s28, 1
        %s473 = sand.u32 %s41, 1
        %s474 = scalar_lea.sflag [#allocation3], %s473
        %s475 = sand.u32 %s41, 1
        %s476 = smul.addr %s475, 8
        %s477 = scalar_lea.vmem [#allocation2], %s476
        // Predicated region
        $region73: #{tpu_custom_call.1} parent=71 // pred_check
          %p478 = pneg %p54
        $region74: #{tpu_custom_call.1} parent=71 // pred_check_branch
          %480 = sbr.rel (%p478) target = $region76
        $region75: #{tpu_custom_call.1} parent=71 // pred_region
          %481 = dma.done %s474, 128
        $region76: #{tpu_custom_call.1} parent=71 // pred_fallthru
          _
        // Predicated region
        $region77: #{tpu_custom_call.1} parent=71 // pred_check
          %p482 = pneg %p75
        $region78: #{tpu_custom_call.1} parent=71 // pred_check_branch
          %484 = sbr.rel (%p482) target = $region80
        $region79: #{tpu_custom_call.1} parent=71 // pred_region
          %485 = dma.done [#allocation6], 2048
        $region80: #{tpu_custom_call.1} parent=71 // pred_fallthru
          _
        // Predicated region
        $region81: #{tpu_custom_call.1} parent=71 // pred_check
          %p486 = pneg %p117
        $region82: #{tpu_custom_call.1} parent=71 // pred_check_branch
          %488 = sbr.rel (%p486) target = $region84
        $region83: #{tpu_custom_call.1} parent=71 // pred_region
          %489 = dma.done [#allocation6], 1024
        $region84: #{tpu_custom_call.1} parent=71 // pred_fallthru
          _
        // Predicated region
        $region85: #{tpu_custom_call.1} parent=71 // pred_check
          %p490 = pneg %p159
        $region86: #{tpu_custom_call.1} parent=71 // pred_check_branch
          %492 = sbr.rel (%p490) target = $region88
        $region87: #{tpu_custom_call.1} parent=71 // pred_region
          %493 = dma.done [#allocation9], 1024
        $region88: #{tpu_custom_call.1} parent=71 // pred_fallthru
          _
        // Predicated region
        $region89: #{tpu_custom_call.1} parent=71 // pred_check
          %p494 = pneg %p201
        $region90: #{tpu_custom_call.1} parent=71 // pred_check_branch
          %496 = sbr.rel (%p494) target = $region92
        $region91: #{tpu_custom_call.1} parent=71 // pred_region
          %497 = dma.done [#allocation9], 1024
        $region92: #{tpu_custom_call.1} parent=71 // pred_fallthru
          _
        // Predicated region
        $region93: #{tpu_custom_call.1} parent=71 // pred_check
          %p498 = pneg %p243
        $region94: #{tpu_custom_call.1} parent=71 // pred_check_branch
          %500 = sbr.rel (%p498) target = $region96
        $region95: #{tpu_custom_call.1} parent=71 // pred_region
          %501 = dma.done [#allocation12], 1024
        $region96: #{tpu_custom_call.1} parent=71 // pred_fallthru
          _
        // Predicated region
        $region97: #{tpu_custom_call.1} parent=71 // pred_check
          %p502 = pneg %p285
        $region98: #{tpu_custom_call.1} parent=71 // pred_check_branch
          %504 = sbr.rel (%p502) target = $region100
        $region99: #{tpu_custom_call.1} parent=71 // pred_region
          %505 = dma.done [#allocation12], 2048
        $region100: #{tpu_custom_call.1} parent=71 // pred_fallthru
          _
        %s506 = sand.u32 %s41, 1
        %s507 = scalar_lea.sflag [#allocation3], %s506
        %s508 = sand.u32 %s41, 1
        %s509 = smul.addr %s508, 8
        %s510 = scalar_lea.vmem [#allocation2], %s509
        %p511 = pneg %p54
        %p512 = pneg %p51
        %p513 = pneg %p75
        %p514 = pneg %p72
        %p515 = pneg %p96
        %p516 = pneg %p93
        %p517 = pneg %p117
        %p518 = pneg %p114
        %p519 = pneg %p138
        %p520 = pneg %p135
        %p521 = pneg %p159
        %p522 = pneg %p156
        %p523 = pneg %p180
        %p524 = pneg %p177
        %p525 = pneg %p201
        %p526 = pneg %p198
        %p527 = pneg %p222
        %p528 = pneg %p219
        %p529 = pneg %p243
        %p530 = pneg %p240
        %p531 = pneg %p264
        %p532 = pneg %p261
        %p533 = pneg %p285
        %p534 = pneg %p282
        %p535 = pneg %p306
        %p536 = pneg %p303
        %p537 = pneg %p332
        %p538 = pneg %p329
        %s539 = sand.u32 %s319, 1
        %s540 = scalar_lea.sflag [#allocation4], %s539
        %s541 = sand.u32 %s319, 1
        %s542 = smul.addr %s541, 8
        %s543 = scalar_lea.vmem [#allocation14], %s542
        %v545 = vld [vmem:[%s477] sm:$0xff]
        %v546 = vld [vmem:[#allocation5] sm:$0xf]
        %v547 = vld [vmem:[#allocation5 + $0x4] sm:$0xf]
        %v548 = vld [vmem:[#allocation5 + $0x8] sm:$0xf]
        %v549 = vld [vmem:[#allocation5 + $0xc] sm:$0xf]
        %v550 = vld [vmem:[#allocation5 + $0x10] sm:$0xf]
        %v551 = vld [vmem:[#allocation5 + $0x14] sm:$0xf]
        %v552 = vld [vmem:[#allocation5 + $0x18] sm:$0xf]
        %v553 = vld [vmem:[#allocation5 + $0x1c] sm:$0xf]
        %v554 = vld [vmem:[#allocation5 + $0x20] sm:$0xf]
        %v555 = vld [vmem:[#allocation5 + $0x24] sm:$0xf]
        %v556 = vld [vmem:[#allocation5 + $0x28] sm:$0xf]
        %v557 = vld [vmem:[#allocation5 + $0x2c] sm:$0xf]
        %v558 = vld [vmem:[#allocation5 + $0x30] sm:$0xf]
        %v559 = vld [vmem:[#allocation5 + $0x34] sm:$0xf]
        %v560 = vld [vmem:[#allocation5 + $0x38] sm:$0xf]
        %v561 = vld [vmem:[#allocation5 + $0x3c] sm:$0xf]
        %v562 = vld [vmem:[#allocation5 + $0x40] sm:$0xf]
        %v563 = vld [vmem:[#allocation5 + $0x44] sm:$0xf]
        %v564 = vld [vmem:[#allocation5 + $0x48] sm:$0xf]
        %v565 = vld [vmem:[#allocation5 + $0x4c] sm:$0xf]
        %v566 = vld [vmem:[#allocation5 + $0x50] sm:$0xf]
        %v567 = vld [vmem:[#allocation5 + $0x54] sm:$0xf]
        %v568 = vld [vmem:[#allocation5 + $0x58] sm:$0xf]
        %v569 = vld [vmem:[#allocation5 + $0x5c] sm:$0xf]
        %v570 = vld [vmem:[#allocation5 + $0x60] sm:$0xf]
        %v571 = vld [vmem:[#allocation5 + $0x64] sm:$0xf]
        %v572 = vld [vmem:[#allocation5 + $0x68] sm:$0xf]
        %v573 = vld [vmem:[#allocation5 + $0x6c] sm:$0xf]
        %v574 = vld [vmem:[#allocation5 + $0x70] sm:$0xf]
        %v575 = vld [vmem:[#allocation5 + $0x74] sm:$0xf]
        %v576 = vld [vmem:[#allocation5 + $0x78] sm:$0xf]
        %v577 = vld [vmem:[#allocation5 + $0x7c] sm:$0xf]
        %v578 = vld [vmem:[%s2] sm:$0x1]
        %v580 = vlaneseq
        %v581 = vshrl.u32 %v580, 7
        %v582 = vsub.s32 0, %v581
        %v583 = vrot.slane %v578, %v582
        %v586 = vunpack.c.l.b16 %v545
        %v587 = vunpack.c.h.b16 %v545
        %v588 = vpack.c.b16 %v586, %v586
        %v589 = vpack.c.b16 %v587, %v587
        %v624 = vunpack.c.l.b16 %v546
        %v625 = vunpack.c.l.b16 %v547
        %v626 = vunpack.c.l.b16 %v548
        %v627 = vunpack.c.l.b16 %v549
        %v628 = vunpack.c.l.b16 %v550
        %v629 = vunpack.c.l.b16 %v551
        %v630 = vunpack.c.l.b16 %v552
        %v631 = vunpack.c.l.b16 %v553
        %v632 = vunpack.c.l.b16 %v554
        %v633 = vunpack.c.l.b16 %v555
        %v634 = vunpack.c.l.b16 %v556
        %v635 = vunpack.c.l.b16 %v557
        %v636 = vunpack.c.l.b16 %v558
        %v637 = vunpack.c.l.b16 %v559
        %v638 = vunpack.c.l.b16 %v560
        %v639 = vunpack.c.l.b16 %v561
        %v640 = vunpack.c.l.b16 %v562
        %v641 = vunpack.c.l.b16 %v563
        %v642 = vunpack.c.l.b16 %v564
        %v643 = vunpack.c.l.b16 %v565
        %v644 = vunpack.c.l.b16 %v566
        %v645 = vunpack.c.l.b16 %v567
        %v646 = vunpack.c.l.b16 %v568
        %v647 = vunpack.c.l.b16 %v569
        %v648 = vunpack.c.l.b16 %v570
        %v649 = vunpack.c.l.b16 %v571
        %v650 = vunpack.c.l.b16 %v572
        %v651 = vunpack.c.l.b16 %v573
        %v652 = vunpack.c.l.b16 %v574
        %v653 = vunpack.c.l.b16 %v575
        %v654 = vunpack.c.l.b16 %v576
        %v655 = vunpack.c.l.b16 %v577
        %v656 = vpack.c.b16 %v625, %v624
        %v657 = vpack.c.b16 %v627, %v626
        %v658 = vpack.c.b16 %v629, %v628
        %v659 = vpack.c.b16 %v631, %v630
        %v660 = vpack.c.b16 %v633, %v632
        %v661 = vpack.c.b16 %v635, %v634
        %v662 = vpack.c.b16 %v637, %v636
        %v663 = vpack.c.b16 %v639, %v638
        %v664 = vpack.c.b16 %v641, %v640
        %v665 = vpack.c.b16 %v643, %v642
        %v666 = vpack.c.b16 %v645, %v644
        %v667 = vpack.c.b16 %v647, %v646
        %v668 = vpack.c.b16 %v649, %v648
        %v669 = vpack.c.b16 %v651, %v650
        %v670 = vpack.c.b16 %v653, %v652
        %v671 = vpack.c.b16 %v655, %v654
        %688 = vmatprep.subr.bf16.mxu0 0
        %689 = vmatpush1.bf16.msra.mxu0 %v656
        %690 = vmatprep.subr.bf16.mxu0 0
        %691 = vmatpush1.bf16.msra.mxu0 %v657
        %692 = vmatprep.subr.bf16.mxu0 0
        %693 = vmatpush1.bf16.msra.mxu0 %v658
        %694 = vmatprep.subr.bf16.mxu0 0
        %695 = vmatpush1.bf16.msra.mxu0 %v659
        %696 = vmatprep.subr.bf16.mxu0 0
        %697 = vmatpush1.bf16.msra.mxu0 %v660
        %698 = vmatprep.subr.bf16.mxu0 0
        %699 = vmatpush1.bf16.msra.mxu0 %v661
        %700 = vmatprep.subr.bf16.mxu0 0
        %701 = vmatpush1.bf16.msra.mxu0 %v662
        %702 = vmatprep.subr.bf16.mxu0 0
        %703 = vmatpush1.bf16.msra.mxu0 %v663
        %704 = vmatprep.subr.bf16.mxu0 0
        %705 = vmatpush1.bf16.msra.mxu0 %v664
        %706 = vmatprep.subr.bf16.mxu0 0
        %707 = vmatpush1.bf16.msra.mxu0 %v665
        %708 = vmatprep.subr.bf16.mxu0 0
        %709 = vmatpush1.bf16.msra.mxu0 %v666
        %710 = vmatprep.subr.bf16.mxu0 0
        %711 = vmatpush1.bf16.msra.mxu0 %v667
        %712 = vmatprep.subr.bf16.mxu0 0
        %713 = vmatpush1.bf16.msra.mxu0 %v668
        %714 = vmatprep.subr.bf16.mxu0 0
        %715 = vmatpush1.bf16.msra.mxu0 %v669
        %716 = vmatprep.subr.bf16.mxu0 0
        %717 = vmatpush1.bf16.msra.mxu0 %v670
        %718 = vmatprep.subr.bf16.mxu0 0
        %719 = vmatpush1.bf16.msra.mxu0 %v671
        %720 = vmatprep.mubr.bf16.mxu0 %v589
        %721 = vmatmul.mubr.bf16.gmra.mrb[0].mxu0 %v588
        %v722 = vpop.f32.mrb[0].mxu0
        %v723 = vadd.f32 %v583, %v722
        %v724 = vpop.f32.mrb[0].mxu0
        %v725 = vpop.f32.mrb[0].mxu0
        %v726 = vpop.f32.mrb[0].mxu0
        %727 = vdwg.mxu0
        %v728 = vmax.f32 %v723, 0.0
        %v729 = vpack.c.bf16 %v728, %v728
        %v730 = vld [vmem:[#allocation7] sm:$0xf]
        %v731 = vld [vmem:[#allocation7 + $0x4] sm:$0xf]
        %v732 = vld [vmem:[#allocation7 + $0x8] sm:$0xf]
        %v733 = vld [vmem:[#allocation7 + $0xc] sm:$0xf]
        %v734 = vld [vmem:[#allocation7 + $0x10] sm:$0xf]
        %v735 = vld [vmem:[#allocation7 + $0x14] sm:$0xf]
        %v736 = vld [vmem:[#allocation7 + $0x18] sm:$0xf]
        %v737 = vld [vmem:[#allocation7 + $0x1c] sm:$0xf]
        %v738 = vld [vmem:[#allocation7 + $0x20] sm:$0xf]
        %v739 = vld [vmem:[#allocation7 + $0x24] sm:$0xf]
        %v740 = vld [vmem:[#allocation7 + $0x28] sm:$0xf]
        %v741 = vld [vmem:[#allocation7 + $0x2c] sm:$0xf]
        %v742 = vld [vmem:[#allocation7 + $0x30] sm:$0xf]
        %v743 = vld [vmem:[#allocation7 + $0x34] sm:$0xf]
        %v744 = vld [vmem:[#allocation7 + $0x38] sm:$0xf]
        %v745 = vld [vmem:[#allocation7 + $0x3c] sm:$0xf]
        %v746 = vld [vmem:[%s4] sm:$0x1]
        %v748 = vlaneseq
        %v749 = vshrl.u32 %v748, 7
        %v750 = vsub.s32 0, %v749
        %v751 = vrot.slane %v746, %v750
        %v769 = vunpack.c.l.b16 %v730
        %v770 = vunpack.c.l.b16 %v731
        %v771 = vunpack.c.l.b16 %v732
        %v772 = vunpack.c.l.b16 %v733
        %v773 = vunpack.c.l.b16 %v734
        %v774 = vunpack.c.l.b16 %v735
        %v775 = vunpack.c.l.b16 %v736
        %v776 = vunpack.c.l.b16 %v737
        %v777 = vunpack.c.l.b16 %v738
        %v778 = vunpack.c.l.b16 %v739
        %v779 = vunpack.c.l.b16 %v740
        %v780 = vunpack.c.l.b16 %v741
        %v781 = vunpack.c.l.b16 %v742
        %v782 = vunpack.c.l.b16 %v743
        %v783 = vunpack.c.l.b16 %v744
        %v784 = vunpack.c.l.b16 %v745
        %v785 = vpack.c.b16 %v770, %v769
        %v786 = vpack.c.b16 %v772, %v771
        %v787 = vpack.c.b16 %v774, %v773
        %v788 = vpack.c.b16 %v776, %v775
        %v789 = vpack.c.b16 %v778, %v777
        %v790 = vpack.c.b16 %v780, %v779
        %v791 = vpack.c.b16 %v782, %v781
        %v792 = vpack.c.b16 %v784, %v783
        %801 = vmatprep.subr.bf16.mxu0 0
        %802 = vmatpush1.bf16.msra.mxu0 %v785
        %803 = vmatprep.subr.bf16.mxu0 0
        %804 = vmatpush1.bf16.msra.mxu0 %v786
        %805 = vmatprep.subr.bf16.mxu0 0
        %806 = vmatpush1.bf16.msra.mxu0 %v787
        %807 = vmatprep.subr.bf16.mxu0 0
        %808 = vmatpush1.bf16.msra.mxu0 %v788
        %809 = vmatprep.subr.bf16.mxu0 0
        %810 = vmatpush1.bf16.msra.mxu0 %v789
        %811 = vmatprep.subr.bf16.mxu0 0
        %812 = vmatpush1.bf16.msra.mxu0 %v790
        %813 = vmatprep.subr.bf16.mxu0 0
        %814 = vmatpush1.bf16.msra.mxu0 %v791
        %815 = vmatprep.subr.bf16.mxu0 0
        %816 = vmatpush1.bf16.msra.mxu0 %v792
        %817 = vmatprep.subr.bf16.mxu0 0
        %818 = vmatpush1.bf16.msra.mxu0 0
        %819 = vmatprep.subr.bf16.mxu0 0
        %820 = vmatpush1.bf16.msra.mxu0 0
        %821 = vmatprep.subr.bf16.mxu0 0
        %822 = vmatpush1.bf16.msra.mxu0 0
        %823 = vmatprep.subr.bf16.mxu0 0
        %824 = vmatpush1.bf16.msra.mxu0 0
        %825 = vmatprep.subr.bf16.mxu0 0
        %826 = vmatpush1.bf16.msra.mxu0 0
        %827 = vmatprep.subr.bf16.mxu0 0
        %828 = vmatpush1.bf16.msra.mxu0 0
        %829 = vmatprep.subr.bf16.mxu0 0
        %830 = vmatpush1.bf16.msra.mxu0 0
        %831 = vmatprep.subr.bf16.mxu0 0
        %832 = vmatpush1.bf16.msra.mxu0 0
        %833 = vmatprep.mubr.bf16.mxu0 0
        %834 = vmatmul.mubr.bf16.gmra.mrb[0].mxu0 %v729
        %v835 = vpop.f32.mrb[0].mxu0
        %v836 = vadd.f32 %v751, %v835
        %v837 = vpop.f32.mrb[0].mxu0
        %v838 = vpop.f32.mrb[0].mxu0
        %v839 = vpop.f32.mrb[0].mxu0
        %840 = vdwg.mxu0
        %v841 = vmax.f32 %v836, 0.0
        %v842 = vpack.c.bf16 %v841, %v841
        %v843 = vld [vmem:[#allocation8] sm:$0xf]
        %v844 = vld [vmem:[#allocation8 + $0x4] sm:$0xf]
        %v845 = vld [vmem:[#allocation8 + $0x8] sm:$0xf]
        %v846 = vld [vmem:[#allocation8 + $0xc] sm:$0xf]
        %v847 = vld [vmem:[#allocation8 + $0x10] sm:$0xf]
        %v848 = vld [vmem:[#allocation8 + $0x14] sm:$0xf]
        %v849 = vld [vmem:[#allocation8 + $0x18] sm:$0xf]
        %v850 = vld [vmem:[#allocation8 + $0x1c] sm:$0xf]
        %v851 = vld [vmem:[#allocation8 + $0x20] sm:$0xf]
        %v852 = vld [vmem:[#allocation8 + $0x24] sm:$0xf]
        %v853 = vld [vmem:[#allocation8 + $0x28] sm:$0xf]
        %v854 = vld [vmem:[#allocation8 + $0x2c] sm:$0xf]
        %v855 = vld [vmem:[#allocation8 + $0x30] sm:$0xf]
        %v856 = vld [vmem:[#allocation8 + $0x34] sm:$0xf]
        %v857 = vld [vmem:[#allocation8 + $0x38] sm:$0xf]
        %v858 = vld [vmem:[#allocation8 + $0x3c] sm:$0xf]
        %v859 = vld [vmem:[%s6] sm:$0x1]
        %v861 = vlaneseq
        %v862 = vshrl.u32 %v861, 7
        %v863 = vsub.s32 0, %v862
        %v864 = vrot.slane %v859, %v863
        %v882 = vunpack.c.l.b16 %v843
        %v883 = vunpack.c.l.b16 %v844
        %v884 = vunpack.c.l.b16 %v845
        %v885 = vunpack.c.l.b16 %v846
        %v886 = vunpack.c.l.b16 %v847
        %v887 = vunpack.c.l.b16 %v848
        %v888 = vunpack.c.l.b16 %v849
        %v889 = vunpack.c.l.b16 %v850
        %v890 = vunpack.c.l.b16 %v851
        %v891 = vunpack.c.l.b16 %v852
        %v892 = vunpack.c.l.b16 %v853
        %v893 = vunpack.c.l.b16 %v854
        %v894 = vunpack.c.l.b16 %v855
        %v895 = vunpack.c.l.b16 %v856
        %v896 = vunpack.c.l.b16 %v857
        %v897 = vunpack.c.l.b16 %v858
        %v898 = vpack.c.b16 %v883, %v882
        %v899 = vpack.c.b16 %v885, %v884
        %v900 = vpack.c.b16 %v887, %v886
        %v901 = vpack.c.b16 %v889, %v888
        %v902 = vpack.c.b16 %v891, %v890
        %v903 = vpack.c.b16 %v893, %v892
        %v904 = vpack.c.b16 %v895, %v894
        %v905 = vpack.c.b16 %v897, %v896
        %914 = vmatprep.subr.bf16.mxu0 0
        %915 = vmatpush1.bf16.msra.mxu0 %v898
        %916 = vmatprep.subr.bf16.mxu0 0
        %917 = vmatpush1.bf16.msra.mxu0 %v899
        %918 = vmatprep.subr.bf16.mxu0 0
        %919 = vmatpush1.bf16.msra.mxu0 %v900
        %920 = vmatprep.subr.bf16.mxu0 0
        %921 = vmatpush1.bf16.msra.mxu0 %v901
        %922 = vmatprep.subr.bf16.mxu0 0
        %923 = vmatpush1.bf16.msra.mxu0 %v902
        %924 = vmatprep.subr.bf16.mxu0 0
        %925 = vmatpush1.bf16.msra.mxu0 %v903
        %926 = vmatprep.subr.bf16.mxu0 0
        %927 = vmatpush1.bf16.msra.mxu0 %v904
        %928 = vmatprep.subr.bf16.mxu0 0
        %929 = vmatpush1.bf16.msra.mxu0 %v905
        %930 = vmatprep.subr.bf16.mxu0 0
        %931 = vmatpush1.bf16.msra.mxu0 0
        %932 = vmatprep.subr.bf16.mxu0 0
        %933 = vmatpush1.bf16.msra.mxu0 0
        %934 = vmatprep.subr.bf16.mxu0 0
        %935 = vmatpush1.bf16.msra.mxu0 0
        %936 = vmatprep.subr.bf16.mxu0 0
        %937 = vmatpush1.bf16.msra.mxu0 0
        %938 = vmatprep.subr.bf16.mxu0 0
        %939 = vmatpush1.bf16.msra.mxu0 0
        %940 = vmatprep.subr.bf16.mxu0 0
        %941 = vmatpush1.bf16.msra.mxu0 0
        %942 = vmatprep.subr.bf16.mxu0 0
        %943 = vmatpush1.bf16.msra.mxu0 0
        %944 = vmatprep.subr.bf16.mxu0 0
        %945 = vmatpush1.bf16.msra.mxu0 0
        %946 = vmatprep.mubr.bf16.mxu0 0
        %947 = vmatmul.mubr.bf16.gmra.mrb[0].mxu0 %v842
        %v948 = vpop.f32.mrb[0].mxu0
        %v949 = vadd.f32 %v864, %v948
        %v950 = vpop.f32.mrb[0].mxu0
        %v951 = vpop.f32.mrb[0].mxu0
        %v952 = vpop.f32.mrb[0].mxu0
        %953 = vdwg.mxu0
        %v954 = vmax.f32 %v949, 0.0
        %v955 = vpack.c.bf16 %v954, %v954
        %v956 = vld [vmem:[#allocation10] sm:$0xf]
        %v957 = vld [vmem:[#allocation10 + $0x4] sm:$0xf]
        %v958 = vld [vmem:[#allocation10 + $0x8] sm:$0xf]
        %v959 = vld [vmem:[#allocation10 + $0xc] sm:$0xf]
        %v960 = vld [vmem:[#allocation10 + $0x10] sm:$0xf]
        %v961 = vld [vmem:[#allocation10 + $0x14] sm:$0xf]
        %v962 = vld [vmem:[#allocation10 + $0x18] sm:$0xf]
        %v963 = vld [vmem:[#allocation10 + $0x1c] sm:$0xf]
        %v964 = vld [vmem:[#allocation10 + $0x20] sm:$0xf]
        %v965 = vld [vmem:[#allocation10 + $0x24] sm:$0xf]
        %v966 = vld [vmem:[#allocation10 + $0x28] sm:$0xf]
        %v967 = vld [vmem:[#allocation10 + $0x2c] sm:$0xf]
        %v968 = vld [vmem:[#allocation10 + $0x30] sm:$0xf]
        %v969 = vld [vmem:[#allocation10 + $0x34] sm:$0xf]
        %v970 = vld [vmem:[#allocation10 + $0x38] sm:$0xf]
        %v971 = vld [vmem:[#allocation10 + $0x3c] sm:$0xf]
        %v972 = vld [vmem:[%s8] sm:$0x1]
        %v974 = vlaneseq
        %v975 = vshrl.u32 %v974, 7
        %v976 = vsub.s32 0, %v975
        %v977 = vrot.slane %v972, %v976
        %v995 = vunpack.c.l.b16 %v956
        %v996 = vunpack.c.l.b16 %v957
        %v997 = vunpack.c.l.b16 %v958
        %v998 = vunpack.c.l.b16 %v959
        %v999 = vunpack.c.l.b16 %v960
        %v1000 = vunpack.c.l.b16 %v961
        %v1001 = vunpack.c.l.b16 %v962
        %v1002 = vunpack.c.l.b16 %v963
        %v1003 = vunpack.c.l.b16 %v964
        %v1004 = vunpack.c.l.b16 %v965
        %v1005 = vunpack.c.l.b16 %v966
        %v1006 = vunpack.c.l.b16 %v967
        %v1007 = vunpack.c.l.b16 %v968
        %v1008 = vunpack.c.l.b16 %v969
        %v1009 = vunpack.c.l.b16 %v970
        %v1010 = vunpack.c.l.b16 %v971
        %v1011 = vpack.c.b16 %v996, %v995
        %v1012 = vpack.c.b16 %v998, %v997
        %v1013 = vpack.c.b16 %v1000, %v999
        %v1014 = vpack.c.b16 %v1002, %v1001
        %v1015 = vpack.c.b16 %v1004, %v1003
        %v1016 = vpack.c.b16 %v1006, %v1005
        %v1017 = vpack.c.b16 %v1008, %v1007
        %v1018 = vpack.c.b16 %v1010, %v1009
        %1027 = vmatprep.subr.bf16.mxu0 0
        %1028 = vmatpush1.bf16.msra.mxu0 %v1011
        %1029 = vmatprep.subr.bf16.mxu0 0
        %1030 = vmatpush1.bf16.msra.mxu0 %v1012
        %1031 = vmatprep.subr.bf16.mxu0 0
        %1032 = vmatpush1.bf16.msra.mxu0 %v1013
        %1033 = vmatprep.subr.bf16.mxu0 0
        %1034 = vmatpush1.bf16.msra.mxu0 %v1014
        %1035 = vmatprep.subr.bf16.mxu0 0
        %1036 = vmatpush1.bf16.msra.mxu0 %v1015
        %1037 = vmatprep.subr.bf16.mxu0 0
        %1038 = vmatpush1.bf16.msra.mxu0 %v1016
        %1039 = vmatprep.subr.bf16.mxu0 0
        %1040 = vmatpush1.bf16.msra.mxu0 %v1017
        %1041 = vmatprep.subr.bf16.mxu0 0
        %1042 = vmatpush1.bf16.msra.mxu0 %v1018
        %1043 = vmatprep.subr.bf16.mxu0 0
        %1044 = vmatpush1.bf16.msra.mxu0 0
        %1045 = vmatprep.subr.bf16.mxu0 0
        %1046 = vmatpush1.bf16.msra.mxu0 0
        %1047 = vmatprep.subr.bf16.mxu0 0
        %1048 = vmatpush1.bf16.msra.mxu0 0
        %1049 = vmatprep.subr.bf16.mxu0 0
        %1050 = vmatpush1.bf16.msra.mxu0 0
        %1051 = vmatprep.subr.bf16.mxu0 0
        %1052 = vmatpush1.bf16.msra.mxu0 0
        %1053 = vmatprep.subr.bf16.mxu0 0
        %1054 = vmatpush1.bf16.msra.mxu0 0
        %1055 = vmatprep.subr.bf16.mxu0 0
        %1056 = vmatpush1.bf16.msra.mxu0 0
        %1057 = vmatprep.subr.bf16.mxu0 0
        %1058 = vmatpush1.bf16.msra.mxu0 0
        %1059 = vmatprep.mubr.bf16.mxu0 0
        %1060 = vmatmul.mubr.bf16.gmra.mrb[0].mxu0 %v955
        %v1061 = vpop.f32.mrb[0].mxu0
        %v1062 = vadd.f32 %v977, %v1061
        %v1063 = vpop.f32.mrb[0].mxu0
        %v1064 = vpop.f32.mrb[0].mxu0
        %v1065 = vpop.f32.mrb[0].mxu0
        %1066 = vdwg.mxu0
        %v1067 = vmax.f32 %v1062, 0.0
        %v1068 = vpack.c.bf16 %v1067, %v1067
        %v1069 = vld [vmem:[#allocation11] sm:$0xf]
        %v1070 = vld [vmem:[#allocation11 + $0x4] sm:$0xf]
        %v1071 = vld [vmem:[#allocation11 + $0x8] sm:$0xf]
        %v1072 = vld [vmem:[#allocation11 + $0xc] sm:$0xf]
        %v1073 = vld [vmem:[#allocation11 + $0x10] sm:$0xf]
        %v1074 = vld [vmem:[#allocation11 + $0x14] sm:$0xf]
        %v1075 = vld [vmem:[#allocation11 + $0x18] sm:$0xf]
        %v1076 = vld [vmem:[#allocation11 + $0x1c] sm:$0xf]
        %v1077 = vld [vmem:[#allocation11 + $0x20] sm:$0xf]
        %v1078 = vld [vmem:[#allocation11 + $0x24] sm:$0xf]
        %v1079 = vld [vmem:[#allocation11 + $0x28] sm:$0xf]
        %v1080 = vld [vmem:[#allocation11 + $0x2c] sm:$0xf]
        %v1081 = vld [vmem:[#allocation11 + $0x30] sm:$0xf]
        %v1082 = vld [vmem:[#allocation11 + $0x34] sm:$0xf]
        %v1083 = vld [vmem:[#allocation11 + $0x38] sm:$0xf]
        %v1084 = vld [vmem:[#allocation11 + $0x3c] sm:$0xf]
        %v1085 = vld [vmem:[%s10] sm:$0x1]
        %v1087 = vlaneseq
        %v1088 = vshrl.u32 %v1087, 7
        %v1089 = vsub.s32 0, %v1088
        %v1090 = vrot.slane %v1085, %v1089
        %v1108 = vunpack.c.l.b16 %v1069
        %v1109 = vunpack.c.l.b16 %v1070
        %v1110 = vunpack.c.l.b16 %v1071
        %v1111 = vunpack.c.l.b16 %v1072
        %v1112 = vunpack.c.l.b16 %v1073
        %v1113 = vunpack.c.l.b16 %v1074
        %v1114 = vunpack.c.l.b16 %v1075
        %v1115 = vunpack.c.l.b16 %v1076
        %v1116 = vunpack.c.l.b16 %v1077
        %v1117 = vunpack.c.l.b16 %v1078
        %v1118 = vunpack.c.l.b16 %v1079
        %v1119 = vunpack.c.l.b16 %v1080
        %v1120 = vunpack.c.l.b16 %v1081
        %v1121 = vunpack.c.l.b16 %v1082
        %v1122 = vunpack.c.l.b16 %v1083
        %v1123 = vunpack.c.l.b16 %v1084
        %v1124 = vpack.c.b16 %v1109, %v1108
        %v1125 = vpack.c.b16 %v1111, %v1110
        %v1126 = vpack.c.b16 %v1113, %v1112
        %v1127 = vpack.c.b16 %v1115, %v1114
        %v1128 = vpack.c.b16 %v1117, %v1116
        %v1129 = vpack.c.b16 %v1119, %v1118
        %v1130 = vpack.c.b16 %v1121, %v1120
        %v1131 = vpack.c.b16 %v1123, %v1122
        %1140 = vmatprep.subr.bf16.mxu0 0
        %1141 = vmatpush1.bf16.msra.mxu0 %v1124
        %1142 = vmatprep.subr.bf16.mxu0 0
        %1143 = vmatpush1.bf16.msra.mxu0 %v1125
        %1144 = vmatprep.subr.bf16.mxu0 0
        %1145 = vmatpush1.bf16.msra.mxu0 %v1126
        %1146 = vmatprep.subr.bf16.mxu0 0
        %1147 = vmatpush1.bf16.msra.mxu0 %v1127
        %1148 = vmatprep.subr.bf16.mxu0 0
        %1149 = vmatpush1.bf16.msra.mxu0 %v1128
        %1150 = vmatprep.subr.bf16.mxu0 0
        %1151 = vmatpush1.bf16.msra.mxu0 %v1129
        %1152 = vmatprep.subr.bf16.mxu0 0
        %1153 = vmatpush1.bf16.msra.mxu0 %v1130
        %1154 = vmatprep.subr.bf16.mxu0 0
        %1155 = vmatpush1.bf16.msra.mxu0 %v1131
        %1156 = vmatprep.subr.bf16.mxu0 0
        %1157 = vmatpush1.bf16.msra.mxu0 0
        %1158 = vmatprep.subr.bf16.mxu0 0
        %1159 = vmatpush1.bf16.msra.mxu0 0
        %1160 = vmatprep.subr.bf16.mxu0 0
        %1161 = vmatpush1.bf16.msra.mxu0 0
        %1162 = vmatprep.subr.bf16.mxu0 0
        %1163 = vmatpush1.bf16.msra.mxu0 0
        %1164 = vmatprep.subr.bf16.mxu0 0
        %1165 = vmatpush1.bf16.msra.mxu0 0
        %1166 = vmatprep.subr.bf16.mxu0 0
        %1167 = vmatpush1.bf16.msra.mxu0 0
        %1168 = vmatprep.subr.bf16.mxu0 0
        %1169 = vmatpush1.bf16.msra.mxu0 0
        %1170 = vmatprep.subr.bf16.mxu0 0
        %1171 = vmatpush1.bf16.msra.mxu0 0
        %1172 = vmatprep.mubr.bf16.mxu0 0
        %1173 = vmatmul.mubr.bf16.gmra.mrb[0].mxu0 %v1068
        %v1174 = vpop.f32.mrb[0].mxu0
        %v1175 = vadd.f32 %v1090, %v1174
        %v1176 = vpop.f32.mrb[0].mxu0
        %v1177 = vpop.f32.mrb[0].mxu0
        %v1178 = vpop.f32.mrb[0].mxu0
        %1179 = vdwg.mxu0
        %v1180 = vmax.f32 %v1175, 0.0
        %v1181 = vpack.c.bf16 %v1180, %v1180
        %v1182 = vld [vmem:[#allocation13] sm:$0xff]
        %v1183 = vld [vmem:[#allocation13 + $0x8] sm:$0xff]
        %v1184 = vld [vmem:[#allocation13 + $0x10] sm:$0xff]
        %v1185 = vld [vmem:[#allocation13 + $0x18] sm:$0xff]
        %v1186 = vld [vmem:[#allocation13 + $0x20] sm:$0xff]
        %v1187 = vld [vmem:[#allocation13 + $0x28] sm:$0xff]
        %v1188 = vld [vmem:[#allocation13 + $0x30] sm:$0xff]
        %v1189 = vld [vmem:[#allocation13 + $0x38] sm:$0xff]
        %v1190 = vld [vmem:[#allocation13 + $0x40] sm:$0xff]
        %v1191 = vld [vmem:[#allocation13 + $0x48] sm:$0xff]
        %v1192 = vld [vmem:[#allocation13 + $0x50] sm:$0xff]
        %v1193 = vld [vmem:[#allocation13 + $0x58] sm:$0xff]
        %v1194 = vld [vmem:[#allocation13 + $0x60] sm:$0xff]
        %v1195 = vld [vmem:[#allocation13 + $0x68] sm:$0xff]
        %v1196 = vld [vmem:[#allocation13 + $0x70] sm:$0xff]
        %v1197 = vld [vmem:[#allocation13 + $0x78] sm:$0xff]
        %v1198 = vld [vmem:[%s12] sm:$0x3]
        %v1200 = vlaneseq
        %v1201 = vshrl.u32 %v1200, 7
        %v1202 = vsub.s32 0, %v1201
        %v1203 = vrot.slane %v1198, %v1202
        %v1204 = vlaneseq
        %v1205 = vshrl.u32 %v1204, 7
        %v1206 = vsub.s32 1, %v1205
        %v1207 = vrot.slane %v1198, %v1206
        %v1226 = vunpack.c.l.b16 %v1182
        %v1227 = vunpack.c.h.b16 %v1182
        %v1228 = vunpack.c.l.b16 %v1183
        %v1229 = vunpack.c.h.b16 %v1183
        %v1230 = vunpack.c.l.b16 %v1184
        %v1231 = vunpack.c.h.b16 %v1184
        %v1232 = vunpack.c.l.b16 %v1185
        %v1233 = vunpack.c.h.b16 %v1185
        %v1234 = vunpack.c.l.b16 %v1186
        %v1235 = vunpack.c.h.b16 %v1186
        %v1236 = vunpack.c.l.b16 %v1187
        %v1237 = vunpack.c.h.b16 %v1187
        %v1238 = vunpack.c.l.b16 %v1188
        %v1239 = vunpack.c.h.b16 %v1188
        %v1240 = vunpack.c.l.b16 %v1189
        %v1241 = vunpack.c.h.b16 %v1189
        %v1242 = vunpack.c.l.b16 %v1190
        %v1243 = vunpack.c.h.b16 %v1190
        %v1244 = vunpack.c.l.b16 %v1191
        %v1245 = vunpack.c.h.b16 %v1191
        %v1246 = vunpack.c.l.b16 %v1192
        %v1247 = vunpack.c.h.b16 %v1192
        %v1248 = vunpack.c.l.b16 %v1193
        %v1249 = vunpack.c.h.b16 %v1193
        %v1250 = vunpack.c.l.b16 %v1194
        %v1251 = vunpack.c.h.b16 %v1194
        %v1252 = vunpack.c.l.b16 %v1195
        %v1253 = vunpack.c.h.b16 %v1195
        %v1254 = vunpack.c.l.b16 %v1196
        %v1255 = vunpack.c.h.b16 %v1196
        %v1256 = vunpack.c.l.b16 %v1197
        %v1257 = vunpack.c.h.b16 %v1197
        %v1258 = vpack.c.b16 %v1228, %v1226
        %v1259 = vpack.c.b16 %v1229, %v1227
        %v1260 = vpack.c.b16 %v1232, %v1230
        %v1261 = vpack.c.b16 %v1233, %v1231
        %v1262 = vpack.c.b16 %v1236, %v1234
        %v1263 = vpack.c.b16 %v1237, %v1235
        %v1264 = vpack.c.b16 %v1240, %v1238
        %v1265 = vpack.c.b16 %v1241, %v1239
        %v1266 = vpack.c.b16 %v1244, %v1242
        %v1267 = vpack.c.b16 %v1245, %v1243
        %v1268 = vpack.c.b16 %v1248, %v1246
        %v1269 = vpack.c.b16 %v1249, %v1247
        %v1270 = vpack.c.b16 %v1252, %v1250
        %v1271 = vpack.c.b16 %v1253, %v1251
        %v1272 = vpack.c.b16 %v1256, %v1254
        %v1273 = vpack.c.b16 %v1257, %v1255
        %1290 = vmatprep.subr.bf16.mxu0 %v1259
        %1291 = vmatpush1.bf16.msra.mxu0 %v1258
        %1292 = vmatprep.subr.bf16.mxu0 %v1261
        %1293 = vmatpush1.bf16.msra.mxu0 %v1260
        %1294 = vmatprep.subr.bf16.mxu0 %v1263
        %1295 = vmatpush1.bf16.msra.mxu0 %v1262
        %1296 = vmatprep.subr.bf16.mxu0 %v1265
        %1297 = vmatpush1.bf16.msra.mxu0 %v1264
        %1298 = vmatprep.subr.bf16.mxu0 %v1267
        %1299 = vmatpush1.bf16.msra.mxu0 %v1266
        %1300 = vmatprep.subr.bf16.mxu0 %v1269
        %1301 = vmatpush1.bf16.msra.mxu0 %v1268
        %1302 = vmatprep.subr.bf16.mxu0 %v1271
        %1303 = vmatpush1.bf16.msra.mxu0 %v1270
        %1304 = vmatprep.subr.bf16.mxu0 %v1273
        %1305 = vmatpush1.bf16.msra.mxu0 %v1272
        %1306 = vmatprep.subr.bf16.mxu0 0
        %1307 = vmatpush1.bf16.msra.mxu0 0
        %1308 = vmatprep.subr.bf16.mxu0 0
        %1309 = vmatpush1.bf16.msra.mxu0 0
        %1310 = vmatprep.subr.bf16.mxu0 0
        %1311 = vmatpush1.bf16.msra.mxu0 0
        %1312 = vmatprep.subr.bf16.mxu0 0
        %1313 = vmatpush1.bf16.msra.mxu0 0
        %1314 = vmatprep.subr.bf16.mxu0 0
        %1315 = vmatpush1.bf16.msra.mxu0 0
        %1316 = vmatprep.subr.bf16.mxu0 0
        %1317 = vmatpush1.bf16.msra.mxu0 0
        %1318 = vmatprep.subr.bf16.mxu0 0
        %1319 = vmatpush1.bf16.msra.mxu0 0
        %1320 = vmatprep.subr.bf16.mxu0 0
        %1321 = vmatpush1.bf16.msra.mxu0 0
        %1322 = vmatprep.mubr.bf16.mxu0 0
        %1323 = vmatmul.mubr.bf16.gmra.mrb[0].mxu0 %v1181
        %v1324 = vpop.f32.mrb[0].mxu0
        %v1325 = vadd.f32 %v1203, %v1324
        %v1326 = vpop.f32.mrb[0].mxu0
        %v1327 = vadd.f32 %v1207, %v1326
        %v1328 = vpop.f32.mrb[0].mxu0
        %v1329 = vpop.f32.mrb[0].mxu0
        %1330 = vdwg.mxu0
        %v1331 = vmul.f32 %v1325, 0.5
        %v1332 = vmul.f32 %v1327, 0.5
        %v1333 = vtanh.pop %v1331
        %v1334 = vtanh.pop %v1332
        %v1335 = vadd.f32 %v1333, 1.0
        %v1336 = vadd.f32 %v1334, 1.0
        %v1337 = vmul.f32 %v1335, 0.5
        %v1338 = vmul.f32 %v1336, 0.5
        %v1339 = vpack.c.bf16 %v1337, %v1337
        %v1340 = vpack.c.bf16 %v1338, %v1338
        %v1343 = vunpack.c.l.b16 %v1339
        %v1344 = vunpack.c.l.b16 %v1340
        %v1345 = vpack.c.b16 %v1344, %v1343
        %1347 = vst [vmem:[%s543] sm:$0xff] %v1345
        %s1348 = sand.u32 %s319, 1
        %s1349 = scalar_lea.sflag [#allocation4], %s1348
        %s1350 = sand.u32 %s319, 1
        %s1351 = smul.addr %s1350, 8
        %s1352 = scalar_lea.vmem [#allocation14], %s1351
        // Predicated region
        $region101: #{tpu_custom_call.1} parent=71 // pred_check
          %p1353 = pneg %p329
        $region102: #{tpu_custom_call.1} parent=71 // pred_check_branch
          %1355 = sbr.rel (%p1353) target = $region104
        $region103: #{tpu_custom_call.1} parent=71 // pred_region
          %s1357 = ssub.s32 128, 128
          %1358 = vsyncadd %s1349, %s1357
          %s1359 = smul.addr %s33, 2
          %s1360 = smul.addr %s1359, 64
          %s1361 = scalar_lea.hbm %s13, %s1360
          %s1363 = sshll.u32 %s1352, 4
          %s1364 = int_to_ptr.vmem [resolvable:$true] %s1363
          %1366 = dma.vmem_to_hbm [thread:$0]  %s1364, 128, %s1361, %s1349
        $region104: #{tpu_custom_call.1} parent=71 // pred_fallthru
          _
      $region72: #{tpu_custom_call.1} parent=5 // pred_fallthru
        _
      %p1367 = scmp.le.s32.totalorder 2, %s28
      // Predicated region
      $region105: #{tpu_custom_call.1} parent=5 // pred_check
        %p1368 = pneg %p1367
      $region106: #{tpu_custom_call.1} parent=5 // pred_check_branch
        %1370 = sbr.rel (%p1368) target = $region108
      $region107: #{tpu_custom_call.1} parent=5 // pred_region
        %s1371 = ssub.s32 %s28, 2
        // Predicated region
        $region109: #{tpu_custom_call.1} parent=107 // pred_check
          %p1372 = pneg %p335
        $region110: #{tpu_custom_call.1} parent=107 // pred_check_branch
          %1374 = sbr.rel (%p1372) target = $region112
        $region111: #{tpu_custom_call.1} parent=107 // pred_region
          %s1375 = sand.u32 %s320, 1
          %s1376 = scalar_lea.sflag [#allocation4], %s1375
          %s1377 = sand.u32 %s320, 1
          %s1378 = smul.addr %s1377, 8
          %s1379 = scalar_lea.vmem [#allocation14], %s1378
          %1380 = dma.done %s1376, 128
        $region112: #{tpu_custom_call.1} parent=107 // pred_fallthru
          _
      $region108: #{tpu_custom_call.1} parent=5 // pred_fallthru
        _
    $region6: #{tpu_custom_call.1} parent=1 // loop_footer
      %s32 = sadd.s32 1, %s28
    $region7: #{tpu_custom_call.1} parent=1 // loop_footer_branch
      %27 = sbr.rel target = $region3
    $region8: #{tpu_custom_call.1} parent=1 // loop_exit
      _
    %1381 = vsyncpa [#allocation3], 1
    %s1382 = scalar_lea.sflag [#allocation3], 1
    %1383 = vsyncpa %s1382, 1
    %1384 = vsyncpa [#allocation6], 1
    %1385 = vsyncpa [#allocation9], 1
    %1386 = vsyncpa [#allocation12], 1
    %1387 = vsyncpa [#allocation4], 1
    %s1388 = scalar_lea.sflag [#allocation4], 1
    %1389 = vsyncpa %s1388, 1

</llo_original>
